<compile_context>
chip_gen: v7x
topology: tpu7x:2x2x1
jax: 0.10.0
libtpu: 0.0.40
codegen_flags: <defaults>
</compile_context>

<pallas_src>
import jax
import jax.numpy as jnp
from jax.experimental import pallas as pl
from jax.experimental.pallas import tpu as pltpu

_VMEM_LIMIT = 64 * 1024 * 1024  # raise 16/32 MiB scoped default; within v7x physical


# ---------------------------------------------------------------------------
# Tiled matmul + bias:  out = x @ w + b   (bf16 operands, f32 accumulation)
# ---------------------------------------------------------------------------
def _matmul_bias_kernel(x_ref, w_ref, b_ref, o_ref, acc_ref):
    k = pl.program_id(2)

    @pl.when(k == 0)
    def _():
        acc_ref[...] = jnp.zeros_like(acc_ref)

    acc_ref[...] += jnp.dot(x_ref[...], w_ref[...],
                            preferred_element_type=jnp.float32)

    @pl.when(k == pl.num_programs(2) - 1)
    def _():
        o_ref[...] = (acc_ref[...] + b_ref[...]).astype(o_ref.dtype)


def _pick_tile(dim, max_tile):
    """Largest multiple of 128 that divides `dim` and is <= max_tile."""
    assert dim % 128 == 0, f"dim {dim} must be a multiple of 128"
    t = min(dim, max_tile)
    t -= t % 128
    while dim % t:
        t -= 128
    return t


def matmul_bias(x, w, b, *, out_dtype=jnp.float32, max_tn=512, max_tk=512):
    """(M, K) @ (K, N) + (1, N) via a tiled Pallas MXU kernel."""
    M, K = x.shape
    K2, N = w.shape
    assert K == K2 and b.shape == (1, N)

    # bf16 matmul operands, f32 accumulation (bf16-native MXU on v6e/v7x).
    x = x.astype(jnp.bfloat16)
    w = w.astype(jnp.bfloat16)
    b = b.astype(jnp.float32)

    # Pad M up to a multiple of 128 so every block is a clean (8,128) tile.
    m_pad = -(-M // 128) * 128
    if m_pad != M:
        x = jnp.pad(x, ((0, m_pad - M), (0, 0)))
    tm = 256 if m_pad % 256 == 0 else 128
    tn = _pick_tile(N, max_tn)   # V-tiling: W_lin^T streamed per (k, j) tile
    tk = _pick_tile(K, max_tk)

    grid = (m_pad // tm, N // tn, K // tk)
    out = pl.pallas_call(
        _matmul_bias_kernel,
        out_shape=jax.ShapeDtypeStruct((m_pad, N), out_dtype),
        grid_spec=pltpu.PrefetchScalarGridSpec(
            num_scalar_prefetch=0,
            grid=grid,
            in_specs=[
                pl.BlockSpec((tm, tk), lambda i, j, k: (i, k)),
                pl.BlockSpec((tk, tn), lambda i, j, k: (k, j)),
                pl.BlockSpec((1, tn), lambda i, j, k: (0, j)),
            ],
            out_specs=pl.BlockSpec((tm, tn), lambda i, j, k: (i, j)),
            scratch_shapes=[pltpu.VMEM((tm, tn), jnp.float32)],
        ),
        compiler_params=pltpu.CompilerParams(
            dimension_semantics=("parallel", "parallel", "arbitrary"),
            vmem_limit_bytes=_VMEM_LIMIT,
        ),
    )(x, w, b)
    return out[:M] if m_pad != M else out


# ---------------------------------------------------------------------------
# LSTM recurrence: gates_x (T, B, 4H) already contains x@W_ih^T + bias.
# Per step only h @ W_hh^T + elementwise gates; whole T loop in one call.
# ---------------------------------------------------------------------------
def _lstm_recurrence_kernel(gx_ref, whh_ref, hid_ref, h_scr, c_scr):
    T = gx_ref.shape[0]
    H = h_scr.shape[-1]
    h_scr[...] = jnp.zeros_like(h_scr)
    c_scr[...] = jnp.zeros_like(c_scr)
    whh = whh_ref[...]                      # (H, 4H) bf16, loop-invariant

    @pl.loop(0, T)
    def _(t):
        h = h_scr[...]                      # (B, H) f32 state
        c = c_scr[...]
        gates = gx_ref[t] + jnp.dot(h.astype(whh.dtype), whh,
                                    preferred_element_type=jnp.float32)
        # PyTorch nn.LSTM gate order: i, f, g, o (H is a multiple of 128 so
        # these are whole-vreg lane slices).
        i_g = jax.nn.sigmoid(gates[:, 0 * H:1 * H])
        f_g = jax.nn.sigmoid(gates[:, 1 * H:2 * H])
        g_g = jnp.tanh(gates[:, 2 * H:3 * H])
        o_g = jax.nn.sigmoid(gates[:, 3 * H:4 * H])
        c_new = f_g * c + i_g * g_g
        h_new = o_g * jnp.tanh(c_new)
        c_scr[...] = c_new
        h_scr[...] = h_new
        hid_ref[t] = h_new.astype(hid_ref.dtype)


def lstm_recurrence(gates_x, w_hh_t):
    """gates_x: (T, B, 4H) f32;  w_hh_t: (H, 4H).  Returns hiddens (T, B, H) f32."""
    T, B, four_h = gates_x.shape
    H = four_h // 4
    w_hh_t = w_hh_t.astype(jnp.bfloat16)
    # Single grid step: whole gates_x resident in VMEM, T-loop via pl.loop.
    # (For very long T this would be chunked over a grid axis with carried
    #  h/c scratch; unnecessary at caption lengths.)
    return pl.pallas_call(
        _lstm_recurrence_kernel,
        out_shape=jax.ShapeDtypeStruct((T, B, H), jnp.float32),
        grid=(1,),
        in_specs=[
            pl.BlockSpec((T, B, four_h), lambda i: (0, 0, 0)),
            pl.BlockSpec((H, four_h), lambda i: (0, 0)),
        ],
        out_specs=pl.BlockSpec((T, B, H), lambda i: (0, 0, 0)),
        scratch_shapes=[
            pltpu.VMEM((B, H), jnp.float32),   # h state
            pltpu.VMEM((B, H), jnp.float32),   # c state
        ],
        compiler_params=pltpu.CompilerParams(
            dimension_semantics=("arbitrary",),
            vmem_limit_bytes=_VMEM_LIMIT,
        ),
    )(gates_x, w_hh_t)


# ---------------------------------------------------------------------------
# DecoderRNN.forward
# ---------------------------------------------------------------------------
def decoder_rnn_forward(features, captions, params):
    """features: (B, E) f32, captions: (B, S) int32 -> logits (B, S, V) f32."""
    embed_w = params["embed_w"]        # (V, E)
    w_ih_t = params["w_ih_t"]          # (E, 4H)
    w_hh_t = params["w_hh_t"]          # (H, 4H)
    b_gates = params["b_gates"]        # (1, 4H) = b_ih + b_hh
    w_lin_t = params["w_lin_t"]        # (H, V)
    b_lin = params["b_lin"]            # (1, V)

    B, E = features.shape
    H = w_hh_t.shape[0]
    V = w_lin_t.shape[1]
    assert E % 128 == 0 and H % 128 == 0 and V % 128 == 0, (
        "pad embed/hidden/vocab sizes to multiples of 128 for lane-aligned tiles")

    # --- plain-JAX glue: embedding gather + prepend image features at t=0 ---
    cap = captions[:, :-1]                                       # (B, S-1)
    emb = jnp.take(embed_w, cap, axis=0)                         # (B, S-1, E)
    inputs = jnp.concatenate(
        [features[None, :, :], jnp.swapaxes(emb, 0, 1)], axis=0)  # (T, B, E)
    T = inputs.shape[0]

    # Phase 1: batched input projection (hoisted out of the serial loop).
    gates_x = matmul_bias(inputs.reshape(T * B, E), w_ih_t, b_gates)  # (T*B, 4H)
    gates_x = gates_x.reshape(T, B, 4 * H)

    # Phase 2: serial LSTM recurrence (only h @ W_hh^T per step).
    hiddens = lstm_recurrence(gates_x, w_hh_t)                    # (T, B, H)

    # Phase 3: batched vocab projection, V tiled (lane-dense stores).
    logits = matmul_bias(hiddens.reshape(T * B, H), w_lin_t, b_lin)   # (T*B, V)
    return jnp.swapaxes(logits.reshape(T, B, V), 0, 1)            # (B, T, V)


def init_params(key, embed_size, hidden_size, vocab_size):
    ks = jax.random.split(key, 7)
    scale = 0.1
    embed_w = scale * jax.random.normal(ks[0], (vocab_size, embed_size), jnp.float32)
    w_ih = scale * jax.random.normal(ks[1], (4 * hidden_size, embed_size), jnp.float32)
    w_hh = scale * jax.random.normal(ks[2], (4 * hidden_size, hidden_size), jnp.float32)
    b_ih = scale * jax.random.normal(ks[3], (4 * hidden_size,), jnp.float32)
    b_hh = scale * jax.random.normal(ks[4], (4 * hidden_size,), jnp.float32)
    w_lin = scale * jax.random.normal(ks[5], (vocab_size, hidden_size), jnp.float32)
    b_lin = scale * jax.random.normal(ks[6], (vocab_size,), jnp.float32)
    return {
        "embed_w": embed_w,
        "w_ih_t": w_ih.T,                       # (E, 4H)
        "w_hh_t": w_hh.T,                       # (H, 4H)
        "b_gates": (b_ih + b_hh)[None, :],      # (1, 4H)
        "w_lin_t": w_lin.T,                     # (H, V)
        "b_lin": b_lin[None, :],                # (1, V)
    }


def decoder_rnn_reference(features, captions, params):
    """Pure-JAX f32 reference matching PyTorch nn.LSTM (gate order i,f,g,o)."""
    cap = captions[:, :-1]
    embeddings = jnp.take(params["embed_w"], cap, axis=0)
    inputs = jnp.concatenate([features[:, None, :], embeddings], axis=1)
    B = inputs.shape[0]
    H = params["w_hh_t"].shape[0]

    def step(carry, x_t):
        h, c = carry
        gates = x_t @ params["w_ih_t"] + h @ params["w_hh_t"] + params["b_gates"]
        i = jax.nn.sigmoid(gates[:, 0 * H:1 * H])
        f = jax.nn.sigmoid(gates[:, 1 * H:2 * H])
        g = jnp.tanh(gates[:, 2 * H:3 * H])
        o = jax.nn.sigmoid(gates[:, 3 * H:4 * H])
        c = f * c + i * g
        h = o * jnp.tanh(c)
        return (h, c), h

    h0 = jnp.zeros((B, H), jnp.float32)
    c0 = jnp.zeros((B, H), jnp.float32)
    _, hs = jax.lax.scan(step, (h0, c0), jnp.swapaxes(inputs, 0, 1))
    hiddens = jnp.swapaxes(hs, 0, 1)
    return hiddens @ params["w_lin_t"] + params["b_lin"]


if __name__ == "__main__":
    # Small, TPU-tile-friendly sizes.
    B, E, H, V, S = 8, 128, 128, 256, 8     # captions: (B, S+1) -> T = S+1 steps

    key = jax.random.PRNGKey(0)
    k_par, k_feat, k_cap = jax.random.split(key, 3)

    params = init_params(k_par, E, H, V)
    features = jax.random.normal(k_feat, (B, E), jnp.float32)
    captions = jax.random.randint(k_cap, (B, S + 1), 0, V, jnp.int32)

    fwd = jax.jit(decoder_rnn_forward)
    out = jax.block_until_ready(fwd(features, captions, params))

    ref = decoder_rnn_reference(features, captions, params)
    assert out.shape == (B, S + 1, V) == ref.shape
    # bf16 matmul operands (f32 accumulation) vs. a full-f32 reference.
    assert jnp.allclose(out, ref, atol=5e-2, rtol=5e-2), (
        f"max abs err {float(jnp.max(jnp.abs(out - ref)))}")

    print("KERNEL_OK")
</pallas_src>

<mosaic_0001>
module attributes {stable_mosaic.version = 11 : i64} {
  func.func @_matmul_bias_kernel(%arg0: i32, %arg1: i32, %arg2: i32, %arg3: memref<128x128xbf16, #tpu.memory_space<vmem>>, %arg4: memref<128x512xbf16, #tpu.memory_space<vmem>>, %arg5: memref<1x512xf32, #tpu.memory_space<vmem>>, %arg6: memref<128x512xf32, #tpu.memory_space<vmem>>, %arg7: memref<128x512xf32, #tpu.memory_space<vmem>>) attributes {dimension_semantics = [#tpu.dimension_semantics<parallel>, #tpu.dimension_semantics<parallel>, #tpu.dimension_semantics<arbitrary>], iteration_bounds = array<i64: 1, 1, 1>, scalar_prefetch = 0 : i64, scratch_operands = 1 : i64, tpu.core_type = #tpu.core_type<tc>, window_params = [{transform_indices = @transform_0, window_bounds = array<i64: 128, 128>}, {transform_indices = @transform_1, window_bounds = array<i64: 128, 512>}, {transform_indices = @transform_2, window_bounds = array<i64: 1, 512>}, {transform_indices = @transform_3, window_bounds = array<i64: 128, 512>}]} {
    %c0_i32 = arith.constant 0 : i32
    %0 = arith.cmpi eq, %arg2, %c0_i32 : i32
    %1 = arith.extui %0 : i1 to i32
    %c0_i32_0 = arith.constant 0 : i32
    %2 = arith.cmpi ne, %1, %c0_i32_0 : i32
    scf.if %2 {
      %cst_10 = arith.constant 0.000000e+00 : f32
      %12 = vector.broadcast %cst_10 : f32 to vector<128x512xf32>
      %c0_11 = arith.constant 0 : index
      %c0_12 = arith.constant 0 : index
      %13 = vector.load %arg7[%c0_11, %c0_12] : memref<128x512xf32, #tpu.memory_space<vmem>>, vector<128x512xf32>
      tpu.vector_store %arg7[%c0_11, %c0_12], %12 {strides = array<i32>} : memref<128x512xf32, #tpu.memory_space<vmem>>, vector<128x512xf32>,
    } else {
    }
    %c0 = arith.constant 0 : index
    %c0_1 = arith.constant 0 : index
    %3 = vector.load %arg7[%c0, %c0_1] : memref<128x512xf32, #tpu.memory_space<vmem>>, vector<128x512xf32>
    %c0_2 = arith.constant 0 : index
    %c0_3 = arith.constant 0 : index
    %4 = vector.load %arg3[%c0_2, %c0_3] : memref<128x128xbf16, #tpu.memory_space<vmem>>, vector<128x128xbf16>
    %c0_4 = arith.constant 0 : index
    %c0_5 = arith.constant 0 : index
    %5 = vector.load %arg4[%c0_4, %c0_5] : memref<128x512xbf16, #tpu.memory_space<vmem>>, vector<128x512xbf16>
    %cst = arith.constant dense<0.000000e+00> : vector<128x512xf32>
    %6 = tpu.matmul %4, %5, %cst {dimension_numbers = #tpu.dot_dimension_numbers<[1], [0], [0], [1], [0, 0, 1, 1], [], []>} : vector<128x128xbf16>, vector<128x512xbf16>, vector<128x512xf32> -> vector<128x512xf32>
    %7 = arith.addf %3, %6 : vector<128x512xf32>
    %c0_6 = arith.constant 0 : index
    %c0_7 = arith.constant 0 : index
    %8 = vector.load %arg7[%c0_6, %c0_7] : memref<128x512xf32, #tpu.memory_space<vmem>>, vector<128x512xf32>
    tpu.vector_store %arg7[%c0_6, %c0_7], %7 {strides = array<i32>} : memref<128x512xf32, #tpu.memory_space<vmem>>, vector<128x512xf32>,
    %c0_i32_8 = arith.constant 0 : i32
    %9 = arith.cmpi eq, %arg2, %c0_i32_8 : i32
    %10 = arith.extui %9 : i1 to i32
    %c0_i32_9 = arith.constant 0 : i32
    %11 = arith.cmpi ne, %10, %c0_i32_9 : i32
    scf.if %11 {
      %c0_10 = arith.constant 0 : index
      %c0_11 = arith.constant 0 : index
      %12 = vector.load %arg7[%c0_10, %c0_11] : memref<128x512xf32, #tpu.memory_space<vmem>>, vector<128x512xf32>
      %c0_12 = arith.constant 0 : index
      %c0_13 = arith.constant 0 : index
      %13 = vector.load %arg5[%c0_12, %c0_13] : memref<1x512xf32, #tpu.memory_space<vmem>>, vector<1x512xf32>
      %14 = vector.broadcast %13 : vector<1x512xf32> to vector<128x512xf32>
      %15 = arith.addf %12, %14 : vector<128x512xf32>
      %c0_14 = arith.constant 0 : index
      %c0_15 = arith.constant 0 : index
      %16 = vector.load %arg6[%c0_14, %c0_15] : memref<128x512xf32, #tpu.memory_space<vmem>>, vector<128x512xf32>
      tpu.vector_store %arg6[%c0_14, %c0_15], %15 {strides = array<i32>} : memref<128x512xf32, #tpu.memory_space<vmem>>, vector<128x512xf32>,
    } else {
    }
    return
  }
  func.func @transform_0(%arg0: i32, %arg1: i32, %arg2: i32) -> (i32, i32) {
    %c0_i32 = arith.constant 0 : i32
    return %arg0, %arg2 : i32, i32
  }
  func.func @transform_1(%arg0: i32, %arg1: i32, %arg2: i32) -> (i32, i32) {
    %c0_i32 = arith.constant 0 : i32
    return %arg2, %arg1 : i32, i32
  }
  func.func @transform_2(%arg0: i32, %arg1: i32, %arg2: i32) -> (i32, i32) {
    %c0_i32 = arith.constant 0 : i32
    %c0_i32_0 = arith.constant 0 : i32
    return %c0_i32, %arg1 : i32, i32
  }
  func.func @transform_3(%arg0: i32, %arg1: i32, %arg2: i32) -> (i32, i32) {
    %c0_i32 = arith.constant 0 : i32
    return %arg0, %arg1 : i32, i32
  }
}

module attributes {stable_mosaic.version = 11 : i64} {
  func.func @_lstm_recurrence_kernel(%arg0: i32, %arg1: memref<9x8x512xf32, #tpu.memory_space<vmem>>, %arg2: memref<128x512xbf16, #tpu.memory_space<vmem>>, %arg3: memref<9x8x128xf32, #tpu.memory_space<vmem>>, %arg4: memref<8x128xf32, #tpu.memory_space<vmem>>, %arg5: memref<8x128xf32, #tpu.memory_space<vmem>>) attributes {dimension_semantics = [#tpu.dimension_semantics<arbitrary>], iteration_bounds = array<i64: 1>, scalar_prefetch = 0 : i64, scratch_operands = 2 : i64, tpu.core_type = #tpu.core_type<tc>, window_params = [{pipeline_mode = #tpu.pipeline_mode<synchronous>, transform_indices = @transform_0, window_bounds = array<i64: 9, 8, 512>}, {pipeline_mode = #tpu.pipeline_mode<synchronous>, transform_indices = @transform_1, window_bounds = array<i64: 128, 512>}, {pipeline_mode = #tpu.pipeline_mode<synchronous>, transform_indices = @transform_2, window_bounds = array<i64: 9, 8, 128>}]} {
    %cst = arith.constant 0.000000e+00 : f32
    %0 = vector.broadcast %cst : f32 to vector<8x128xf32>
    %c0 = arith.constant 0 : index
    %c0_0 = arith.constant 0 : index
    %1 = vector.load %arg4[%c0, %c0_0] : memref<8x128xf32, #tpu.memory_space<vmem>>, vector<8x128xf32>
    tpu.vector_store %arg4[%c0, %c0_0], %0 {strides = array<i32>} : memref<8x128xf32, #tpu.memory_space<vmem>>, vector<8x128xf32>,
    %cst_1 = arith.constant 0.000000e+00 : f32
    %2 = vector.broadcast %cst_1 : f32 to vector<8x128xf32>
    %c0_2 = arith.constant 0 : index
    %c0_3 = arith.constant 0 : index
    %3 = vector.load %arg5[%c0_2, %c0_3] : memref<8x128xf32, #tpu.memory_space<vmem>>, vector<8x128xf32>
    tpu.vector_store %arg5[%c0_2, %c0_3], %2 {strides = array<i32>} : memref<8x128xf32, #tpu.memory_space<vmem>>, vector<8x128xf32>,
    %c0_4 = arith.constant 0 : index
    %c0_5 = arith.constant 0 : index
    %4 = vector.load %arg2[%c0_4, %c0_5] : memref<128x512xbf16, #tpu.memory_space<vmem>>, vector<128x512xbf16>
    %c0_i32 = arith.constant 0 : i32
    %c9_i32 = arith.constant 9 : i32
    %5 = arith.addi %c0_i32, %c9_i32 : i32
    %c1_i32 = arith.constant 1 : i32
    scf.for %arg6 = %c0_i32 to %5 step %c1_i32  : i32 {
      %c1_i32_7 = arith.constant 1 : i32
      %6 = arith.muli %arg6, %c1_i32_7 : i32
      %c0_i32_8 = arith.constant 0 : i32
      %7 = arith.addi %c0_i32_8, %6 : i32
      %c0_9 = arith.constant 0 : index
      %c0_10 = arith.constant 0 : index
      %8 = vector.load %arg4[%c0_9, %c0_10] : memref<8x128xf32, #tpu.memory_space<vmem>>, vector<8x128xf32>
      %c0_11 = arith.constant 0 : index
      %c0_12 = arith.constant 0 : index
      %9 = vector.load %arg5[%c0_11, %c0_12] : memref<8x128xf32, #tpu.memory_space<vmem>>, vector<8x128xf32>
      %10 = arith.index_cast %7 : i32 to index
      %c0_13 = arith.constant 0 : index
      %c0_14 = arith.constant 0 : index
      %11 = vector.load %arg1[%10, %c0_13, %c0_14] : memref<9x8x512xf32, #tpu.memory_space<vmem>>, vector<1x8x512xf32>
      %12 = vector.shape_cast %11 : vector<1x8x512xf32> to vector<8x512xf32>
      %13 = arith.truncf %8 : vector<8x128xf32> to vector<8x128xbf16>
      %cst_15 = arith.constant dense<0.000000e+00> : vector<8x512xf32>
      %14 = tpu.matmul %13, %4, %cst_15 {dimension_numbers = #tpu.dot_dimension_numbers<[1], [0], [0], [1], [0, 0, 1, 1], [], []>} : vector<8x128xbf16>, vector<128x512xbf16>, vector<8x512xf32> -> vector<8x512xf32>
      %15 = arith.addf %12, %14 : vector<8x512xf32>
      %16 = vector.extract_strided_slice %15 {offsets = [0, 0], sizes = [8, 128], strides = [1, 1]} : vector<8x512xf32> to vector<8x128xf32>
      %17 = arith.negf %16 : vector<8x128xf32>
      %18 = math.exp %17 : vector<8x128xf32>
      %cst_16 = arith.constant 1.000000e+00 : f32
      %19 = vector.broadcast %cst_16 : f32 to vector<8x128xf32>
      %20 = arith.addf %19, %18 : vector<8x128xf32>
      %21 = arith.divf %19, %20 : vector<8x128xf32>
      %22 = vector.extract_strided_slice %15 {offsets = [0, 128], sizes = [8, 128], strides = [1, 1]} : vector<8x512xf32> to vector<8x128xf32>
      %23 = arith.negf %22 : vector<8x128xf32>
      %24 = math.exp %23 : vector<8x128xf32>
      %cst_17 = arith.constant 1.000000e+00 : f32
      %25 = vector.broadcast %cst_17 : f32 to vector<8x128xf32>
      %26 = arith.addf %25, %24 : vector<8x128xf32>
      %27 = arith.divf %25, %26 : vector<8x128xf32>
      %28 = vector.extract_strided_slice %15 {offsets = [0, 256], sizes = [8, 128], strides = [1, 1]} : vector<8x512xf32> to vector<8x128xf32>
      %29 = math.tanh %28 : vector<8x128xf32>
      %30 = vector.extract_strided_slice %15 {offsets = [0, 384], sizes = [8, 128], strides = [1, 1]} : vector<8x512xf32> to vector<8x128xf32>
      %31 = arith.negf %30 : vector<8x128xf32>
      %32 = math.exp %31 : vector<8x128xf32>
      %cst_18 = arith.constant 1.000000e+00 : f32
      %33 = vector.broadcast %cst_18 : f32 to vector<8x128xf32>
      %34 = arith.addf %33, %32 : vector<8x128xf32>
      %35 = arith.divf %33, %34 : vector<8x128xf32>
      %36 = arith.mulf %27, %9 : vector<8x128xf32>
      %37 = arith.mulf %21, %29 : vector<8x128xf32>
      %38 = arith.addf %36, %37 : vector<8x128xf32>
      %39 = math.tanh %38 : vector<8x128xf32>
      %40 = arith.mulf %35, %39 : vector<8x128xf32>
      %c0_19 = arith.constant 0 : index
      %c0_20 = arith.constant 0 : index
      %41 = vector.load %arg5[%c0_19, %c0_20] : memref<8x128xf32, #tpu.memory_space<vmem>>, vector<8x128xf32>
      tpu.vector_store %arg5[%c0_19, %c0_20], %38 {strides = array<i32>} : memref<8x128xf32, #tpu.memory_space<vmem>>, vector<8x128xf32>,
      %c0_21 = arith.constant 0 : index
      %c0_22 = arith.constant 0 : index
      %42 = vector.load %arg4[%c0_21, %c0_22] : memref<8x128xf32, #tpu.memory_space<vmem>>, vector<8x128xf32>
      tpu.vector_store %arg4[%c0_21, %c0_22], %40 {strides = array<i32>} : memref<8x128xf32, #tpu.memory_space<vmem>>, vector<8x128xf32>,
      %43 = arith.index_cast %7 : i32 to index
      %c0_23 = arith.constant 0 : index
      %c0_24 = arith.constant 0 : index
      %44 = vector.load %arg3[%43, %c0_23, %c0_24] : memref<9x8x128xf32, #tpu.memory_space<vmem>>, vector<1x8x128xf32>
      %45 = vector.shape_cast %44 : vector<1x8x128xf32> to vector<8x128xf32>
      %46 = vector.shape_cast %40 : vector<8x128xf32> to vector<1x8x128xf32>
      tpu.vector_store %arg3[%43, %c0_23, %c0_24], %46 {strides = array<i32>} : memref<9x8x128xf32, #tpu.memory_space<vmem>>, vector<1x8x128xf32>,
    }
    %c9_i32_6 = arith.constant 9 : i32
    return
  }
  func.func @transform_0(%arg0: i32) -> (i32, i32, i32) {
    %c0_i32 = arith.constant 0 : i32
    %c0_i32_0 = arith.constant 0 : i32
    %c0_i32_1 = arith.constant 0 : i32
    %c0_i32_2 = arith.constant 0 : i32
    return %c0_i32, %c0_i32_0, %c0_i32_1 : i32, i32, i32
  }
  func.func @transform_1(%arg0: i32) -> (i32, i32) {
    %c0_i32 = arith.constant 0 : i32
    %c0_i32_0 = arith.constant 0 : i32
    %c0_i32_1 = arith.constant 0 : i32
    return %c0_i32, %c0_i32_0 : i32, i32
  }
  func.func @transform_2(%arg0: i32) -> (i32, i32, i32) {
    %c0_i32 = arith.constant 0 : i32
    %c0_i32_0 = arith.constant 0 : i32
    %c0_i32_1 = arith.constant 0 : i32
    %c0_i32_2 = arith.constant 0 : i32
    return %c0_i32, %c0_i32_0, %c0_i32_1 : i32, i32, i32
  }
}

module attributes {stable_mosaic.version = 11 : i64} {
  func.func @_matmul_bias_kernel(%arg0: i32, %arg1: i32, %arg2: i32, %arg3: memref<128x128xbf16, #tpu.memory_space<vmem>>, %arg4: memref<128x256xbf16, #tpu.memory_space<vmem>>, %arg5: memref<1x256xf32, #tpu.memory_space<vmem>>, %arg6: memref<128x256xf32, #tpu.memory_space<vmem>>, %arg7: memref<128x256xf32, #tpu.memory_space<vmem>>) attributes {dimension_semantics = [#tpu.dimension_semantics<parallel>, #tpu.dimension_semantics<parallel>, #tpu.dimension_semantics<arbitrary>], iteration_bounds = array<i64: 1, 1, 1>, scalar_prefetch = 0 : i64, scratch_operands = 1 : i64, tpu.core_type = #tpu.core_type<tc>, window_params = [{transform_indices = @transform_0, window_bounds = array<i64: 128, 128>}, {transform_indices = @transform_1, window_bounds = array<i64: 128, 256>}, {transform_indices = @transform_2, window_bounds = array<i64: 1, 256>}, {transform_indices = @transform_3, window_bounds = array<i64: 128, 256>}]} {
    %c0_i32 = arith.constant 0 : i32
    %0 = arith.cmpi eq, %arg2, %c0_i32 : i32
    %1 = arith.extui %0 : i1 to i32
    %c0_i32_0 = arith.constant 0 : i32
    %2 = arith.cmpi ne, %1, %c0_i32_0 : i32
    scf.if %2 {
      %cst_10 = arith.constant 0.000000e+00 : f32
      %12 = vector.broadcast %cst_10 : f32 to vector<128x256xf32>
      %c0_11 = arith.constant 0 : index
      %c0_12 = arith.constant 0 : index
      %13 = vector.load %arg7[%c0_11, %c0_12] : memref<128x256xf32, #tpu.memory_space<vmem>>, vector<128x256xf32>
      tpu.vector_store %arg7[%c0_11, %c0_12], %12 {strides = array<i32>} : memref<128x256xf32, #tpu.memory_space<vmem>>, vector<128x256xf32>,
    } else {
    }
    %c0 = arith.constant 0 : index
    %c0_1 = arith.constant 0 : index
    %3 = vector.load %arg7[%c0, %c0_1] : memref<128x256xf32, #tpu.memory_space<vmem>>, vector<128x256xf32>
    %c0_2 = arith.constant 0 : index
    %c0_3 = arith.constant 0 : index
    %4 = vector.load %arg3[%c0_2, %c0_3] : memref<128x128xbf16, #tpu.memory_space<vmem>>, vector<128x128xbf16>
    %c0_4 = arith.constant 0 : index
    %c0_5 = arith.constant 0 : index
    %5 = vector.load %arg4[%c0_4, %c0_5] : memref<128x256xbf16, #tpu.memory_space<vmem>>, vector<128x256xbf16>
    %cst = arith.constant dense<0.000000e+00> : vector<128x256xf32>
    %6 = tpu.matmul %4, %5, %cst {dimension_numbers = #tpu.dot_dimension_numbers<[1], [0], [0], [1], [0, 0, 1, 1], [], []>} : vector<128x128xbf16>, vector<128x256xbf16>, vector<128x256xf32> -> vector<128x256xf32>
    %7 = arith.addf %3, %6 : vector<128x256xf32>
    %c0_6 = arith.constant 0 : index
    %c0_7 = arith.constant 0 : index
    %8 = vector.load %arg7[%c0_6, %c0_7] : memref<128x256xf32, #tpu.memory_space<vmem>>, vector<128x256xf32>
    tpu.vector_store %arg7[%c0_6, %c0_7], %7 {strides = array<i32>} : memref<128x256xf32, #tpu.memory_space<vmem>>, vector<128x256xf32>,
    %c0_i32_8 = arith.constant 0 : i32
    %9 = arith.cmpi eq, %arg2, %c0_i32_8 : i32
    %10 = arith.extui %9 : i1 to i32
    %c0_i32_9 = arith.constant 0 : i32
    %11 = arith.cmpi ne, %10, %c0_i32_9 : i32
    scf.if %11 {
      %c0_10 = arith.constant 0 : index
      %c0_11 = arith.constant 0 : index
      %12 = vector.load %arg7[%c0_10, %c0_11] : memref<128x256xf32, #tpu.memory_space<vmem>>, vector<128x256xf32>
      %c0_12 = arith.constant 0 : index
      %c0_13 = arith.constant 0 : index
      %13 = vector.load %arg5[%c0_12, %c0_13] : memref<1x256xf32, #tpu.memory_space<vmem>>, vector<1x256xf32>
      %14 = vector.broadcast %13 : vector<1x256xf32> to vector<128x256xf32>
      %15 = arith.addf %12, %14 : vector<128x256xf32>
      %c0_14 = arith.constant 0 : index
      %c0_15 = arith.constant 0 : index
      %16 = vector.load %arg6[%c0_14, %c0_15] : memref<128x256xf32, #tpu.memory_space<vmem>>, vector<128x256xf32>
      tpu.vector_store %arg6[%c0_14, %c0_15], %15 {strides = array<i32>} : memref<128x256xf32, #tpu.memory_space<vmem>>, vector<128x256xf32>,
    } else {
    }
    return
  }
  func.func @transform_0(%arg0: i32, %arg1: i32, %arg2: i32) -> (i32, i32) {
    %c0_i32 = arith.constant 0 : i32
    return %arg0, %arg2 : i32, i32
  }
  func.func @transform_1(%arg0: i32, %arg1: i32, %arg2: i32) -> (i32, i32) {
    %c0_i32 = arith.constant 0 : i32
    return %arg2, %arg1 : i32, i32
  }
  func.func @transform_2(%arg0: i32, %arg1: i32, %arg2: i32) -> (i32, i32) {
    %c0_i32 = arith.constant 0 : i32
    %c0_i32_0 = arith.constant 0 : i32
    return %c0_i32, %arg1 : i32, i32
  }
  func.func @transform_3(%arg0: i32, %arg1: i32, %arg2: i32) -> (i32, i32) {
    %c0_i32 = arith.constant 0 : i32
    return %arg0, %arg1 : i32, i32
  }
}

</mosaic_0001>

<llo_original>
// kernel: decoder_rnn_forward.4
$region0: #{decoder_rnn_forward.4}
  #allocation0 [shape = 'u32[]', space=smem, size = 0x4, offset = 0x4, fixed_abs, tag = 'smem constant byte address 0x4 - core index']
  #allocation1 [shape = 'u32[144,128]{1,0:T(1,128)}', space=vmem, size = 0x12000, scoped, tag = 'internal scratch']
  #allocation2 [shape = 'f32[8,128]{1,0:T(8,128)}', space=vmem, size = 0x1000, scoped, tag = 'scratch operand']
  #allocation3 [shape = 'f32[8,128]{1,0:T(8,128)}', space=vmem, size = 0x1000, scoped, tag = 'scratch operand']
  %s0 = inlined_call_operand.hbm [shape: f32[9,8,512], index: 0, kind: input, shape index: {}]
  %s1 = inlined_call_operand.hbm [shape: bf16[128,512], index: 1, kind: input, shape index: {}]
  %s2 = inlined_call_operand.hbm [shape: f32[9,8,128], index: 2, kind: output, shape index: {}]
  %s3 = sld [smem:[#allocation0]]
  $region33: #{decoder_rnn_forward.4} parent=0
    _
  %s5 = ssub.s32 1, %s3
  %s6 = scalar_select 0, %s5, %s3
  $region1: #{decoder_rnn_forward.4} parent=0
    #allocation4 [shape = 'u8[147456]{0}', space=vmem, size = 0x24000, scoped, tag = 'input window, operand 0, single buffered']
    #allocation5 [shape = 's32[1]{0}', space=sflag, size = 0x4, scoped, tag = 'scoped memory for decoder_rnn_forward.4']
    #allocation6 [shape = 's32[1]{0}', space=sflag, size = 0x4, scoped, tag = 'scoped memory for decoder_rnn_forward.4']
    #allocation7 [shape = 'u8[131072]{0}', space=vmem, size = 0x20000, scoped, tag = 'input window, operand 1, single buffered']
    #allocation8 [shape = 's32[1]{0}', space=sflag, size = 0x4, scoped, tag = 'scoped memory for decoder_rnn_forward.4']
    #allocation9 [shape = 'u8[36864]{0}', space=vmem, size = 0x9000, scoped, tag = 'output window, operand 0, single buffered']
    %7 = vsyncpa [#allocation5], 0
    %8 = vsyncpa [#allocation8], 0
    %9 = vsyncpa [#allocation6], 0
    // Predicated region
    $region2: #{decoder_rnn_forward.4} parent=1 // pred_check
      _
    $region3: #{decoder_rnn_forward.4} parent=1 // pred_check_branch
      %11 = sbr.rel (0) target = $region5
    $region4: #{decoder_rnn_forward.4} parent=1 // pred_region
      %s13 = ssub.s32 4608, 4608
      %14 = vsyncadd [#allocation5], %s13
      %s15 = sshll.u32 [#allocation4], 4
      %s16 = int_to_ptr.vmem [resolvable:$true] %s15
      %21 = dma.hbm_to_vmem [thread:$0]  %s0, 4608, %s16, [#allocation5], 512, 512, 32
    $region5: #{decoder_rnn_forward.4} parent=1 // pred_fallthru
      _
    // Predicated region
    $region6: #{decoder_rnn_forward.4} parent=1 // pred_check
      _
    $region7: #{decoder_rnn_forward.4} parent=1 // pred_check_branch
      %23 = sbr.rel (0) target = $region9
    $region8: #{decoder_rnn_forward.4} parent=1 // pred_region
      %s25 = ssub.s32 4096, 4096
      %26 = vsyncadd [#allocation8], %s25
      %s27 = sshll.u32 [#allocation7], 4
      %s28 = int_to_ptr.vmem [resolvable:$true] %s27
      %33 = dma.hbm_to_vmem [thread:$0]  %s1, 4096, %s28, [#allocation8], 256, 256, 16
    $region9: #{decoder_rnn_forward.4} parent=1 // pred_fallthru
      _
    // Predicated region
    $region10: #{decoder_rnn_forward.4} parent=1 // pred_check
      _
    $region11: #{decoder_rnn_forward.4} parent=1 // pred_check_branch
      %35 = sbr.rel (0) target = $region13
    $region12: #{decoder_rnn_forward.4} parent=1 // pred_region
      %36 = dma.done [#allocation5], 4608
    $region13: #{decoder_rnn_forward.4} parent=1 // pred_fallthru
      _
    // Predicated region
    $region14: #{decoder_rnn_forward.4} parent=1 // pred_check
      _
    $region15: #{decoder_rnn_forward.4} parent=1 // pred_check_branch
      %38 = sbr.rel (0) target = $region17
    $region16: #{decoder_rnn_forward.4} parent=1 // pred_region
      %39 = dma.done [#allocation8], 4096
    $region17: #{decoder_rnn_forward.4} parent=1 // pred_fallthru
      _
    %41 = vst [vmem:[#allocation2] sm:$0xff] 0.0
    %42 = vst [vmem:[#allocation3] sm:$0xff] 0.0
    %v43 = vld [vmem:[#allocation7] sm:$0xff]
    %v44 = vld [vmem:[#allocation7 + $0x8] sm:$0xff]
    %v45 = vld [vmem:[#allocation7 + $0x10] sm:$0xff]
    %v46 = vld [vmem:[#allocation7 + $0x18] sm:$0xff]
    %v47 = vld [vmem:[#allocation7 + $0x20] sm:$0xff]
    %v48 = vld [vmem:[#allocation7 + $0x28] sm:$0xff]
    %v49 = vld [vmem:[#allocation7 + $0x30] sm:$0xff]
    %v50 = vld [vmem:[#allocation7 + $0x38] sm:$0xff]
    %v51 = vld [vmem:[#allocation7 + $0x40] sm:$0xff]
    %v52 = vld [vmem:[#allocation7 + $0x48] sm:$0xff]
    %v53 = vld [vmem:[#allocation7 + $0x50] sm:$0xff]
    %v54 = vld [vmem:[#allocation7 + $0x58] sm:$0xff]
    %v55 = vld [vmem:[#allocation7 + $0x60] sm:$0xff]
    %v56 = vld [vmem:[#allocation7 + $0x68] sm:$0xff]
    %v57 = vld [vmem:[#allocation7 + $0x70] sm:$0xff]
    %v58 = vld [vmem:[#allocation7 + $0x78] sm:$0xff]
    %v59 = vld [vmem:[#allocation7 + $0x80] sm:$0xff]
    %v60 = vld [vmem:[#allocation7 + $0x88] sm:$0xff]
    %v61 = vld [vmem:[#allocation7 + $0x90] sm:$0xff]
    %v62 = vld [vmem:[#allocation7 + $0x98] sm:$0xff]
    %v63 = vld [vmem:[#allocation7 + $0xa0] sm:$0xff]
    %v64 = vld [vmem:[#allocation7 + $0xa8] sm:$0xff]
    %v65 = vld [vmem:[#allocation7 + $0xb0] sm:$0xff]
    %v66 = vld [vmem:[#allocation7 + $0xb8] sm:$0xff]
    %v67 = vld [vmem:[#allocation7 + $0xc0] sm:$0xff]
    %v68 = vld [vmem:[#allocation7 + $0xc8] sm:$0xff]
    %v69 = vld [vmem:[#allocation7 + $0xd0] sm:$0xff]
    %v70 = vld [vmem:[#allocation7 + $0xd8] sm:$0xff]
    %v71 = vld [vmem:[#allocation7 + $0xe0] sm:$0xff]
    %v72 = vld [vmem:[#allocation7 + $0xe8] sm:$0xff]
    %v73 = vld [vmem:[#allocation7 + $0xf0] sm:$0xff]
    %v74 = vld [vmem:[#allocation7 + $0xf8] sm:$0xff]
    loop: start=0, step=1, limit=9
    $region18: #{decoder_rnn_forward.4} parent=1 // loop_pre_header
      _
    $region19: #{decoder_rnn_forward.4} parent=1 // loop_header
      %s76 = sphi 0, %s80
      %p77 = scmp.ge.s32.totalorder %s76, 9
    $region20: #{decoder_rnn_forward.4} parent=1 // loop_header_branch
      %79 = sbr.rel (%p77) target = $region24
    $region21: #{decoder_rnn_forward.4} parent=1 // loop_body
      %v81 = vld [vmem:[#allocation2] sm:$0xff]
      %v82 = vld [vmem:[#allocation3] sm:$0xff]
      %s83 = smul.u32 %s76, 4
      %s84 = smul.addr %s83, 8
      %s85 = scalar_lea.vmem [#allocation4], %s84
      %v86 = vld [vmem:[%s85] sm:$0xff]
      %v87 = vld [vmem:[%s85 + $0x8] sm:$0xff]
      %v88 = vld [vmem:[%s85 + $0x10] sm:$0xff]
      %v89 = vld [vmem:[%s85 + $0x18] sm:$0xff]
      %v90 = vpack.c.bf16 %v81, %v81
      %v123 = vunpack.c.l.b16 %v43
      %v124 = vunpack.c.h.b16 %v43
      %v125 = vunpack.c.l.b16 %v44
      %v126 = vunpack.c.h.b16 %v44
      %v127 = vunpack.c.l.b16 %v45
      %v128 = vunpack.c.h.b16 %v45
      %v129 = vunpack.c.l.b16 %v46
      %v130 = vunpack.c.h.b16 %v46
      %v131 = vunpack.c.l.b16 %v47
      %v132 = vunpack.c.h.b16 %v47
      %v133 = vunpack.c.l.b16 %v48
      %v134 = vunpack.c.h.b16 %v48
      %v135 = vunpack.c.l.b16 %v49
      %v136 = vunpack.c.h.b16 %v49
      %v137 = vunpack.c.l.b16 %v50
      %v138 = vunpack.c.h.b16 %v50
      %v139 = vunpack.c.l.b16 %v51
      %v140 = vunpack.c.h.b16 %v51
      %v141 = vunpack.c.l.b16 %v52
      %v142 = vunpack.c.h.b16 %v52
      %v143 = vunpack.c.l.b16 %v53
      %v144 = vunpack.c.h.b16 %v53
      %v145 = vunpack.c.l.b16 %v54
      %v146 = vunpack.c.h.b16 %v54
      %v147 = vunpack.c.l.b16 %v55
      %v148 = vunpack.c.h.b16 %v55
      %v149 = vunpack.c.l.b16 %v56
      %v150 = vunpack.c.h.b16 %v56
      %v151 = vunpack.c.l.b16 %v57
      %v152 = vunpack.c.h.b16 %v57
      %v153 = vunpack.c.l.b16 %v58
      %v154 = vunpack.c.h.b16 %v58
      %v155 = vunpack.c.l.b16 %v59
      %v156 = vunpack.c.h.b16 %v59
      %v157 = vunpack.c.l.b16 %v60
      %v158 = vunpack.c.h.b16 %v60
      %v159 = vunpack.c.l.b16 %v61
      %v160 = vunpack.c.h.b16 %v61
      %v161 = vunpack.c.l.b16 %v62
      %v162 = vunpack.c.h.b16 %v62
      %v163 = vunpack.c.l.b16 %v63
      %v164 = vunpack.c.h.b16 %v63
      %v165 = vunpack.c.l.b16 %v64
      %v166 = vunpack.c.h.b16 %v64
      %v167 = vunpack.c.l.b16 %v65
      %v168 = vunpack.c.h.b16 %v65
      %v169 = vunpack.c.l.b16 %v66
      %v170 = vunpack.c.h.b16 %v66
      %v171 = vunpack.c.l.b16 %v67
      %v172 = vunpack.c.h.b16 %v67
      %v173 = vunpack.c.l.b16 %v68
      %v174 = vunpack.c.h.b16 %v68
      %v175 = vunpack.c.l.b16 %v69
      %v176 = vunpack.c.h.b16 %v69
      %v177 = vunpack.c.l.b16 %v70
      %v178 = vunpack.c.h.b16 %v70
      %v179 = vunpack.c.l.b16 %v71
      %v180 = vunpack.c.h.b16 %v71
      %v181 = vunpack.c.l.b16 %v72
      %v182 = vunpack.c.h.b16 %v72
      %v183 = vunpack.c.l.b16 %v73
      %v184 = vunpack.c.h.b16 %v73
      %v185 = vunpack.c.l.b16 %v74
      %v186 = vunpack.c.h.b16 %v74
      %v187 = vpack.c.b16 %v127, %v123
      %v188 = vpack.c.b16 %v128, %v124
      %v189 = vpack.c.b16 %v129, %v125
      %v190 = vpack.c.b16 %v130, %v126
      %v191 = vpack.c.b16 %v135, %v131
      %v192 = vpack.c.b16 %v136, %v132
      %v193 = vpack.c.b16 %v137, %v133
      %v194 = vpack.c.b16 %v138, %v134
      %v195 = vpack.c.b16 %v143, %v139
      %v196 = vpack.c.b16 %v144, %v140
      %v197 = vpack.c.b16 %v145, %v141
      %v198 = vpack.c.b16 %v146, %v142
      %v199 = vpack.c.b16 %v151, %v147
      %v200 = vpack.c.b16 %v152, %v148
      %v201 = vpack.c.b16 %v153, %v149
      %v202 = vpack.c.b16 %v154, %v150
      %v203 = vpack.c.b16 %v159, %v155
      %v204 = vpack.c.b16 %v160, %v156
      %v205 = vpack.c.b16 %v161, %v157
      %v206 = vpack.c.b16 %v162, %v158
      %v207 = vpack.c.b16 %v167, %v163
      %v208 = vpack.c.b16 %v168, %v164
      %v209 = vpack.c.b16 %v169, %v165
      %v210 = vpack.c.b16 %v170, %v166
      %v211 = vpack.c.b16 %v175, %v171
      %v212 = vpack.c.b16 %v176, %v172
      %v213 = vpack.c.b16 %v177, %v173
      %v214 = vpack.c.b16 %v178, %v174
      %v215 = vpack.c.b16 %v183, %v179
      %v216 = vpack.c.b16 %v184, %v180
      %v217 = vpack.c.b16 %v185, %v181
      %v218 = vpack.c.b16 %v186, %v182
      %251 = vmatprep.subr.bf16.mxu0 %v188
      %252 = vmatpush1.bf16.msra.mxu0 %v187
      %253 = vmatprep.subr.bf16.mxu0 %v192
      %254 = vmatpush1.bf16.msra.mxu0 %v191
      %255 = vmatprep.subr.bf16.mxu0 %v196
      %256 = vmatpush1.bf16.msra.mxu0 %v195
      %257 = vmatprep.subr.bf16.mxu0 %v200
      %258 = vmatpush1.bf16.msra.mxu0 %v199
      %259 = vmatprep.subr.bf16.mxu0 %v204
      %260 = vmatpush1.bf16.msra.mxu0 %v203
      %261 = vmatprep.subr.bf16.mxu0 %v208
      %262 = vmatpush1.bf16.msra.mxu0 %v207
      %263 = vmatprep.subr.bf16.mxu0 %v212
      %264 = vmatpush1.bf16.msra.mxu0 %v211
      %265 = vmatprep.subr.bf16.mxu0 %v216
      %266 = vmatpush1.bf16.msra.mxu0 %v215
      %267 = vmatprep.subr.bf16.mxu0 0
      %268 = vmatpush1.bf16.msra.mxu0 0
      %269 = vmatprep.subr.bf16.mxu0 0
      %270 = vmatpush1.bf16.msra.mxu0 0
      %271 = vmatprep.subr.bf16.mxu0 0
      %272 = vmatpush1.bf16.msra.mxu0 0
      %273 = vmatprep.subr.bf16.mxu0 0
      %274 = vmatpush1.bf16.msra.mxu0 0
      %275 = vmatprep.subr.bf16.mxu0 0
      %276 = vmatpush1.bf16.msra.mxu0 0
      %277 = vmatprep.subr.bf16.mxu0 0
      %278 = vmatpush1.bf16.msra.mxu0 0
      %279 = vmatprep.subr.bf16.mxu0 0
      %280 = vmatpush1.bf16.msra.mxu0 0
      %281 = vmatprep.subr.bf16.mxu0 0
      %282 = vmatpush1.bf16.msra.mxu0 0
      %283 = vmatprep.mubr.bf16.mxu0 0
      %284 = vmatmul.mubr.bf16.gmra.mrb[0].mxu0 %v90
      %v285 = vpop.f32.mrb[0].mxu0
      %v286 = vadd.f32 0.0, %v285
      %v287 = vpop.f32.mrb[0].mxu0
      %v288 = vadd.f32 0.0, %v287
      %v289 = vpop.f32.mrb[0].mxu0
      %v290 = vpop.f32.mrb[0].mxu0
      %291 = vdwg.mxu0
      %292 = vmatprep.subr.bf16.mxu0 %v190
      %293 = vmatpush1.bf16.msra.mxu0 %v189
      %294 = vmatprep.subr.bf16.mxu0 %v194
      %295 = vmatpush1.bf16.msra.mxu0 %v193
      %296 = vmatprep.subr.bf16.mxu0 %v198
      %297 = vmatpush1.bf16.msra.mxu0 %v197
      %298 = vmatprep.subr.bf16.mxu0 %v202
      %299 = vmatpush1.bf16.msra.mxu0 %v201
      %300 = vmatprep.subr.bf16.mxu0 %v206
      %301 = vmatpush1.bf16.msra.mxu0 %v205
      %302 = vmatprep.subr.bf16.mxu0 %v210
      %303 = vmatpush1.bf16.msra.mxu0 %v209
      %304 = vmatprep.subr.bf16.mxu0 %v214
      %305 = vmatpush1.bf16.msra.mxu0 %v213
      %306 = vmatprep.subr.bf16.mxu0 %v218
      %307 = vmatpush1.bf16.msra.mxu0 %v217
      %308 = vmatprep.subr.bf16.mxu0 0
      %309 = vmatpush1.bf16.msra.mxu0 0
      %310 = vmatprep.subr.bf16.mxu0 0
      %311 = vmatpush1.bf16.msra.mxu0 0
      %312 = vmatprep.subr.bf16.mxu0 0
      %313 = vmatpush1.bf16.msra.mxu0 0
      %314 = vmatprep.subr.bf16.mxu0 0
      %315 = vmatpush1.bf16.msra.mxu0 0
      %316 = vmatprep.subr.bf16.mxu0 0
      %317 = vmatpush1.bf16.msra.mxu0 0
      %318 = vmatprep.subr.bf16.mxu0 0
      %319 = vmatpush1.bf16.msra.mxu0 0
      %320 = vmatprep.subr.bf16.mxu0 0
      %321 = vmatpush1.bf16.msra.mxu0 0
      %322 = vmatprep.subr.bf16.mxu0 0
      %323 = vmatpush1.bf16.msra.mxu0 0
      %324 = vmatprep.mubr.bf16.mxu0 0
      %325 = vmatmul.mubr.bf16.gmra.mrb[0].mxu0 %v90
      %v326 = vpop.f32.mrb[0].mxu0
      %v327 = vadd.f32 0.0, %v326
      %v328 = vpop.f32.mrb[0].mxu0
      %v329 = vadd.f32 0.0, %v328
      %v330 = vpop.f32.mrb[0].mxu0
      %v331 = vpop.f32.mrb[0].mxu0
      %332 = vdwg.mxu0
      %v333 = vadd.f32 %v86, %v286
      %v334 = vadd.f32 %v87, %v288
      %v335 = vadd.f32 %v88, %v327
      %v336 = vadd.f32 %v89, %v329
      %v337 = vxor.u32 %v333, 2147483648
      %v338 = vmul.f32 %v337, 1.442695
      %v339 = vpow.pop %v338
      %v340 = vadd.f32 %v339, 1.0
      %v341 = vrcp.pop %v340
      %v342 = vmul.f32 1.0, %v341
      %v343 = vxor.u32 %v334, 2147483648
      %v344 = vmul.f32 %v343, 1.442695
      %v345 = vpow.pop %v344
      %v346 = vadd.f32 %v345, 1.0
      %v347 = vrcp.pop %v346
      %v348 = vmul.f32 1.0, %v347
      %v349 = vtanh.pop %v335
      %v350 = vxor.u32 %v336, 2147483648
      %v351 = vmul.f32 %v350, 1.442695
      %v352 = vpow.pop %v351
      %v353 = vadd.f32 %v352, 1.0
      %v354 = vrcp.pop %v353
      %v355 = vmul.f32 1.0, %v354
      %v356 = vmul.f32 %v348, %v82
      %v357 = vmul.f32 %v342, %v349
      %v358 = vadd.f32 %v356, %v357
      %v359 = vtanh.pop %v358
      %v360 = vmul.f32 %v355, %v359
      %361 = vst [vmem:[#allocation3] sm:$0xff] %v358
      %362 = vst [vmem:[#allocation2] sm:$0xff] %v360
      %s363 = smul.u32 %s76, 8
      %s364 = scalar_lea.vmem [#allocation9], %s363
      %365 = vst [vmem:[%s364] sm:$0xff] %v360
    $region22: #{decoder_rnn_forward.4} parent=1 // loop_footer
      %s80 = sadd.s32 1, %s76
    $region23: #{decoder_rnn_forward.4} parent=1 // loop_footer_branch
      %75 = sbr.rel target = $region19
    $region24: #{decoder_rnn_forward.4} parent=1 // loop_exit
      _
    // Predicated region
    $region25: #{decoder_rnn_forward.4} parent=1 // pred_check
      _
    $region26: #{decoder_rnn_forward.4} parent=1 // pred_check_branch
      %367 = sbr.rel (0) target = $region28
    $region27: #{decoder_rnn_forward.4} parent=1 // pred_region
      %s369 = ssub.s32 1152, 1152
      %370 = vsyncadd [#allocation6], %s369
      %s371 = sshll.u32 [#allocation9], 4
      %s372 = int_to_ptr.vmem [resolvable:$true] %s371
      %377 = dma.vmem_to_hbm [thread:$0]  %s372, 1152, %s2, [#allocation6], 128, 128, 8
    $region28: #{decoder_rnn_forward.4} parent=1 // pred_fallthru
      _
    // Predicated region
    $region29: #{decoder_rnn_forward.4} parent=1 // pred_check
      _
    $region30: #{decoder_rnn_forward.4} parent=1 // pred_check_branch
      %379 = sbr.rel (0) target = $region32
    $region31: #{decoder_rnn_forward.4} parent=1 // pred_region
      %380 = dma.done [#allocation6], 1152
    $region32: #{decoder_rnn_forward.4} parent=1 // pred_fallthru
      _
    %381 = vsyncpa [#allocation5], 1
    %382 = vsyncpa [#allocation8], 1
    %383 = vsyncpa [#allocation6], 1

// kernel: decoder_rnn_forward.5
$region0: #{decoder_rnn_forward.5}
  #allocation0 [shape = 'u32[]', space=smem, size = 0x4, offset = 0x4, fixed_abs, tag = 'smem constant byte address 0x4 - core index']
  #allocation1 [shape = 'u32[144,128]{1,0:T(1,128)}', space=vmem, size = 0x12000, scoped, tag = 'internal scratch']
  #allocation2 [shape = 'f32[128,256]{1,0:T(8,128)}', space=vmem, size = 0x20000, scoped, tag = 'scratch operand']
  %s0 = inlined_call_operand.hbm [shape: bf16[128,128], index: 0, kind: input, shape index: {}]
  %s1 = inlined_call_operand.hbm [shape: bf16[128,256], index: 1, kind: input, shape index: {}]
  %s2 = inlined_call_operand.hbm [shape: f32[1,256], index: 2, kind: input, shape index: {}]
  %s3 = inlined_call_operand.hbm [shape: f32[128,256], index: 3, kind: output, shape index: {}]
  %s4 = sld [smem:[#allocation0]]
  $region42: #{decoder_rnn_forward.5} parent=0
    _
  %s6 = ssub.s32 1, %s4
  %s7 = scalar_select 0, %s6, %s4
  $region1: #{decoder_rnn_forward.5} parent=0
    #allocation3 [shape = 'u8[32768]{0}', space=vmem, size = 0x8000, scoped, tag = 'input window, operand 0, single buffered']
    #allocation4 [shape = 's32[1]{0}', space=sflag, size = 0x4, scoped, tag = 'scoped memory for decoder_rnn_forward.5']
    #allocation5 [shape = 's32[1]{0}', space=sflag, size = 0x4, scoped, tag = 'scoped memory for decoder_rnn_forward.5']
    #allocation6 [shape = 'u8[65536]{0}', space=vmem, size = 0x10000, scoped, tag = 'input window, operand 1, single buffered']
    #allocation7 [shape = 's32[1]{0}', space=sflag, size = 0x4, scoped, tag = 'scoped memory for decoder_rnn_forward.5']
    #allocation8 [shape = 'u8[1024]{0}', space=vmem, size = 0x400, scoped, tag = 'input window, operand 2, single buffered']
    #allocation9 [shape = 'u8[131072]{0}', space=vmem, size = 0x20000, scoped, tag = 'output window, operand 0, single buffered']
    %8 = vsyncpa [#allocation4], 0
    %9 = vsyncpa [#allocation7], 0
    %10 = vsyncpa [#allocation5], 0
    // Predicated region
    $region2: #{decoder_rnn_forward.5} parent=1 // pred_check
      _
    $region3: #{decoder_rnn_forward.5} parent=1 // pred_check_branch
      %12 = sbr.rel (0) target = $region5
    $region4: #{decoder_rnn_forward.5} parent=1 // pred_region
      %s14 = ssub.s32 1024, 1024
      %15 = vsyncadd [#allocation4], %s14
      %s16 = sshll.u32 [#allocation3], 4
      %s17 = int_to_ptr.vmem [resolvable:$true] %s16
      %22 = dma.hbm_to_vmem [thread:$0]  %s0, 1024, %s17, [#allocation4], 64, 64, 4
    $region5: #{decoder_rnn_forward.5} parent=1 // pred_fallthru
      _
    // Predicated region
    $region6: #{decoder_rnn_forward.5} parent=1 // pred_check
      _
    $region7: #{decoder_rnn_forward.5} parent=1 // pred_check_branch
      %24 = sbr.rel (0) target = $region9
    $region8: #{decoder_rnn_forward.5} parent=1 // pred_region
      %s26 = ssub.s32 2048, 2048
      %27 = vsyncadd [#allocation7], %s26
      %s28 = sshll.u32 [#allocation6], 4
      %s29 = int_to_ptr.vmem [resolvable:$true] %s28
      %34 = dma.hbm_to_vmem [thread:$0]  %s1, 2048, %s29, [#allocation7], 128, 128, 8
    $region9: #{decoder_rnn_forward.5} parent=1 // pred_fallthru
      _
    // Predicated region
    $region10: #{decoder_rnn_forward.5} parent=1 // pred_check
      _
    $region11: #{decoder_rnn_forward.5} parent=1 // pred_check_branch
      %36 = sbr.rel (0) target = $region13
    $region12: #{decoder_rnn_forward.5} parent=1 // pred_region
      %s38 = ssub.s32 32, 32
      %39 = vsyncadd [#allocation7], %s38
      %s41 = sshll.u32 [#allocation8], 4
      %s42 = int_to_ptr.vmem [resolvable:$true] %s41
      %44 = dma.hbm_to_vmem [thread:$0]  %s2, 32, %s42, [#allocation7]
    $region13: #{decoder_rnn_forward.5} parent=1 // pred_fallthru
      _
    // Predicated region
    $region14: #{decoder_rnn_forward.5} parent=1 // pred_check
      _
    $region15: #{decoder_rnn_forward.5} parent=1 // pred_check_branch
      %46 = sbr.rel (0) target = $region17
    $region16: #{decoder_rnn_forward.5} parent=1 // pred_region
      %47 = dma.done [#allocation4], 1024
    $region17: #{decoder_rnn_forward.5} parent=1 // pred_fallthru
      _
    // Predicated region
    $region18: #{decoder_rnn_forward.5} parent=1 // pred_check
      _
    $region19: #{decoder_rnn_forward.5} parent=1 // pred_check_branch
      %49 = sbr.rel (0) target = $region21
    $region20: #{decoder_rnn_forward.5} parent=1 // pred_region
      %50 = dma.done [#allocation7], 2048
    $region21: #{decoder_rnn_forward.5} parent=1 // pred_fallthru
      _
    // Predicated region
    $region22: #{decoder_rnn_forward.5} parent=1 // pred_check
      _
    $region23: #{decoder_rnn_forward.5} parent=1 // pred_check_branch
      %52 = sbr.rel (0) target = $region25
    $region24: #{decoder_rnn_forward.5} parent=1 // pred_region
      %53 = dma.done [#allocation7], 32
    $region25: #{decoder_rnn_forward.5} parent=1 // pred_fallthru
      _
    %p55 = scmp.eq.s32.totalorder 0, 0
    // Predicated region
    $region26: #{decoder_rnn_forward.5} parent=1 // pred_check
      %p56 = pneg %p55
    $region27: #{decoder_rnn_forward.5} parent=1 // pred_check_branch
      %58 = sbr.rel (%p56) target = $region29
    $region28: #{decoder_rnn_forward.5} parent=1 // pred_region
      %59 = vst [vmem:[#allocation2] sm:$0xff] 0.0
      %60 = vst [vmem:[#allocation2 + $0x8] sm:$0xff] 0.0
      %61 = vst [vmem:[#allocation2 + $0x10] sm:$0xff] 0.0
      %62 = vst [vmem:[#allocation2 + $0x18] sm:$0xff] 0.0
      %63 = vst [vmem:[#allocation2 + $0x20] sm:$0xff] 0.0
      %64 = vst [vmem:[#allocation2 + $0x28] sm:$0xff] 0.0
      %65 = vst [vmem:[#allocation2 + $0x30] sm:$0xff] 0.0
      %66 = vst [vmem:[#allocation2 + $0x38] sm:$0xff] 0.0
      %67 = vst [vmem:[#allocation2 + $0x40] sm:$0xff] 0.0
      %68 = vst [vmem:[#allocation2 + $0x48] sm:$0xff] 0.0
      %69 = vst [vmem:[#allocation2 + $0x50] sm:$0xff] 0.0
      %70 = vst [vmem:[#allocation2 + $0x58] sm:$0xff] 0.0
      %71 = vst [vmem:[#allocation2 + $0x60] sm:$0xff] 0.0
      %72 = vst [vmem:[#allocation2 + $0x68] sm:$0xff] 0.0
      %73 = vst [vmem:[#allocation2 + $0x70] sm:$0xff] 0.0
      %74 = vst [vmem:[#allocation2 + $0x78] sm:$0xff] 0.0
      %75 = vst [vmem:[#allocation2 + $0x80] sm:$0xff] 0.0
      %76 = vst [vmem:[#allocation2 + $0x88] sm:$0xff] 0.0
      %77 = vst [vmem:[#allocation2 + $0x90] sm:$0xff] 0.0
      %78 = vst [vmem:[#allocation2 + $0x98] sm:$0xff] 0.0
      %79 = vst [vmem:[#allocation2 + $0xa0] sm:$0xff] 0.0
      %80 = vst [vmem:[#allocation2 + $0xa8] sm:$0xff] 0.0
      %81 = vst [vmem:[#allocation2 + $0xb0] sm:$0xff] 0.0
      %82 = vst [vmem:[#allocation2 + $0xb8] sm:$0xff] 0.0
      %83 = vst [vmem:[#allocation2 + $0xc0] sm:$0xff] 0.0
      %84 = vst [vmem:[#allocation2 + $0xc8] sm:$0xff] 0.0
      %85 = vst [vmem:[#allocation2 + $0xd0] sm:$0xff] 0.0
      %86 = vst [vmem:[#allocation2 + $0xd8] sm:$0xff] 0.0
      %87 = vst [vmem:[#allocation2 + $0xe0] sm:$0xff] 0.0
      %88 = vst [vmem:[#allocation2 + $0xe8] sm:$0xff] 0.0
      %89 = vst [vmem:[#allocation2 + $0xf0] sm:$0xff] 0.0
      %90 = vst [vmem:[#allocation2 + $0xf8] sm:$0xff] 0.0
    $region29: #{decoder_rnn_forward.5} parent=1 // pred_fallthru
      _
    %v91 = vld [vmem:[#allocation2] sm:$0xff]
    %v92 = vld [vmem:[#allocation2 + $0x8] sm:$0xff]
    %v93 = vld [vmem:[#allocation2 + $0x10] sm:$0xff]
    %v94 = vld [vmem:[#allocation2 + $0x18] sm:$0xff]
    %v95 = vld [vmem:[#allocation2 + $0x20] sm:$0xff]
    %v96 = vld [vmem:[#allocation2 + $0x28] sm:$0xff]
    %v97 = vld [vmem:[#allocation2 + $0x30] sm:$0xff]
    %v98 = vld [vmem:[#allocation2 + $0x38] sm:$0xff]
    %v99 = vld [vmem:[#allocation2 + $0x40] sm:$0xff]
    %v100 = vld [vmem:[#allocation2 + $0x48] sm:$0xff]
    %v101 = vld [vmem:[#allocation2 + $0x50] sm:$0xff]
    %v102 = vld [vmem:[#allocation2 + $0x58] sm:$0xff]
    %v103 = vld [vmem:[#allocation2 + $0x60] sm:$0xff]
    %v104 = vld [vmem:[#allocation2 + $0x68] sm:$0xff]
    %v105 = vld [vmem:[#allocation2 + $0x70] sm:$0xff]
    %v106 = vld [vmem:[#allocation2 + $0x78] sm:$0xff]
    %v107 = vld [vmem:[#allocation2 + $0x80] sm:$0xff]
    %v108 = vld [vmem:[#allocation2 + $0x88] sm:$0xff]
    %v109 = vld [vmem:[#allocation2 + $0x90] sm:$0xff]
    %v110 = vld [vmem:[#allocation2 + $0x98] sm:$0xff]
    %v111 = vld [vmem:[#allocation2 + $0xa0] sm:$0xff]
    %v112 = vld [vmem:[#allocation2 + $0xa8] sm:$0xff]
    %v113 = vld [vmem:[#allocation2 + $0xb0] sm:$0xff]
    %v114 = vld [vmem:[#allocation2 + $0xb8] sm:$0xff]
    %v115 = vld [vmem:[#allocation2 + $0xc0] sm:$0xff]
    %v116 = vld [vmem:[#allocation2 + $0xc8] sm:$0xff]
    %v117 = vld [vmem:[#allocation2 + $0xd0] sm:$0xff]
    %v118 = vld [vmem:[#allocation2 + $0xd8] sm:$0xff]
    %v119 = vld [vmem:[#allocation2 + $0xe0] sm:$0xff]
    %v120 = vld [vmem:[#allocation2 + $0xe8] sm:$0xff]
    %v121 = vld [vmem:[#allocation2 + $0xf0] sm:$0xff]
    %v122 = vld [vmem:[#allocation2 + $0xf8] sm:$0xff]
    %v123 = vld [vmem:[#allocation3] sm:$0xf]
    %v124 = vld [vmem:[#allocation3 + $0x4] sm:$0xf]
    %v125 = vld [vmem:[#allocation3 + $0x8] sm:$0xf]
    %v126 = vld [vmem:[#allocation3 + $0xc] sm:$0xf]
    %v127 = vld [vmem:[#allocation3 + $0x10] sm:$0xf]
    %v128 = vld [vmem:[#allocation3 + $0x14] sm:$0xf]
    %v129 = vld [vmem:[#allocation3 + $0x18] sm:$0xf]
    %v130 = vld [vmem:[#allocation3 + $0x1c] sm:$0xf]
    %v131 = vld [vmem:[#allocation3 + $0x20] sm:$0xf]
    %v132 = vld [vmem:[#allocation3 + $0x24] sm:$0xf]
    %v133 = vld [vmem:[#allocation3 + $0x28] sm:$0xf]
    %v134 = vld [vmem:[#allocation3 + $0x2c] sm:$0xf]
    %v135 = vld [vmem:[#allocation3 + $0x30] sm:$0xf]
    %v136 = vld [vmem:[#allocation3 + $0x34] sm:$0xf]
    %v137 = vld [vmem:[#allocation3 + $0x38] sm:$0xf]
    %v138 = vld [vmem:[#allocation3 + $0x3c] sm:$0xf]
    %v139 = vld [vmem:[#allocation6] sm:$0xff]
    %v140 = vld [vmem:[#allocation6 + $0x8] sm:$0xff]
    %v141 = vld [vmem:[#allocation6 + $0x10] sm:$0xff]
    %v142 = vld [vmem:[#allocation6 + $0x18] sm:$0xff]
    %v143 = vld [vmem:[#allocation6 + $0x20] sm:$0xff]
    %v144 = vld [vmem:[#allocation6 + $0x28] sm:$0xff]
    %v145 = vld [vmem:[#allocation6 + $0x30] sm:$0xff]
    %v146 = vld [vmem:[#allocation6 + $0x38] sm:$0xff]
    %v147 = vld [vmem:[#allocation6 + $0x40] sm:$0xff]
    %v148 = vld [vmem:[#allocation6 + $0x48] sm:$0xff]
    %v149 = vld [vmem:[#allocation6 + $0x50] sm:$0xff]
    %v150 = vld [vmem:[#allocation6 + $0x58] sm:$0xff]
    %v151 = vld [vmem:[#allocation6 + $0x60] sm:$0xff]
    %v152 = vld [vmem:[#allocation6 + $0x68] sm:$0xff]
    %v153 = vld [vmem:[#allocation6 + $0x70] sm:$0xff]
    %v154 = vld [vmem:[#allocation6 + $0x78] sm:$0xff]
    %v171 = vunpack.c.l.b16 %v123
    %v172 = vunpack.c.l.b16 %v124
    %v173 = vunpack.c.l.b16 %v125
    %v174 = vunpack.c.l.b16 %v126
    %v175 = vunpack.c.l.b16 %v127
    %v176 = vunpack.c.l.b16 %v128
    %v177 = vunpack.c.l.b16 %v129
    %v178 = vunpack.c.l.b16 %v130
    %v179 = vunpack.c.l.b16 %v131
    %v180 = vunpack.c.l.b16 %v132
    %v181 = vunpack.c.l.b16 %v133
    %v182 = vunpack.c.l.b16 %v134
    %v183 = vunpack.c.l.b16 %v135
    %v184 = vunpack.c.l.b16 %v136
    %v185 = vunpack.c.l.b16 %v137
    %v186 = vunpack.c.l.b16 %v138
    %v187 = vpack.c.b16 %v172, %v171
    %v188 = vpack.c.b16 %v174, %v173
    %v189 = vpack.c.b16 %v176, %v175
    %v190 = vpack.c.b16 %v178, %v177
    %v191 = vpack.c.b16 %v180, %v179
    %v192 = vpack.c.b16 %v182, %v181
    %v193 = vpack.c.b16 %v184, %v183
    %v194 = vpack.c.b16 %v186, %v185
    %v219 = vunpack.c.l.b16 %v139
    %v220 = vunpack.c.h.b16 %v139
    %v221 = vunpack.c.l.b16 %v140
    %v222 = vunpack.c.h.b16 %v140
    %v223 = vunpack.c.l.b16 %v141
    %v224 = vunpack.c.h.b16 %v141
    %v225 = vunpack.c.l.b16 %v142
    %v226 = vunpack.c.h.b16 %v142
    %v227 = vunpack.c.l.b16 %v143
    %v228 = vunpack.c.h.b16 %v143
    %v229 = vunpack.c.l.b16 %v144
    %v230 = vunpack.c.h.b16 %v144
    %v231 = vunpack.c.l.b16 %v145
    %v232 = vunpack.c.h.b16 %v145
    %v233 = vunpack.c.l.b16 %v146
    %v234 = vunpack.c.h.b16 %v146
    %v235 = vunpack.c.l.b16 %v147
    %v236 = vunpack.c.h.b16 %v147
    %v237 = vunpack.c.l.b16 %v148
    %v238 = vunpack.c.h.b16 %v148
    %v239 = vunpack.c.l.b16 %v149
    %v240 = vunpack.c.h.b16 %v149
    %v241 = vunpack.c.l.b16 %v150
    %v242 = vunpack.c.h.b16 %v150
    %v243 = vunpack.c.l.b16 %v151
    %v244 = vunpack.c.h.b16 %v151
    %v245 = vunpack.c.l.b16 %v152
    %v246 = vunpack.c.h.b16 %v152
    %v247 = vunpack.c.l.b16 %v153
    %v248 = vunpack.c.h.b16 %v153
    %v249 = vunpack.c.l.b16 %v154
    %v250 = vunpack.c.h.b16 %v154
    %v251 = vpack.c.b16 %v221, %v219
    %v252 = vpack.c.b16 %v222, %v220
    %v253 = vpack.c.b16 %v225, %v223
    %v254 = vpack.c.b16 %v226, %v224
    %v255 = vpack.c.b16 %v229, %v227
    %v256 = vpack.c.b16 %v230, %v228
    %v257 = vpack.c.b16 %v233, %v231
    %v258 = vpack.c.b16 %v234, %v232
    %v259 = vpack.c.b16 %v237, %v235
    %v260 = vpack.c.b16 %v238, %v236
    %v261 = vpack.c.b16 %v241, %v239
    %v262 = vpack.c.b16 %v242, %v240
    %v263 = vpack.c.b16 %v245, %v243
    %v264 = vpack.c.b16 %v246, %v244
    %v265 = vpack.c.b16 %v249, %v247
    %v266 = vpack.c.b16 %v250, %v248
    %283 = vmatprep.subr.bf16.mxu0 %v252
    %284 = vmatpush1.bf16.msra.mxu0 %v251
    %285 = vmatprep.subr.bf16.mxu0 %v254
    %286 = vmatpush1.bf16.msra.mxu0 %v253
    %287 = vmatprep.subr.bf16.mxu0 %v256
    %288 = vmatpush1.bf16.msra.mxu0 %v255
    %289 = vmatprep.subr.bf16.mxu0 %v258
    %290 = vmatpush1.bf16.msra.mxu0 %v257
    %291 = vmatprep.subr.bf16.mxu0 %v260
    %292 = vmatpush1.bf16.msra.mxu0 %v259
    %293 = vmatprep.subr.bf16.mxu0 %v262
    %294 = vmatpush1.bf16.msra.mxu0 %v261
    %295 = vmatprep.subr.bf16.mxu0 %v264
    %296 = vmatpush1.bf16.msra.mxu0 %v263
    %297 = vmatprep.subr.bf16.mxu0 %v266
    %298 = vmatpush1.bf16.msra.mxu0 %v265
    %299 = vmatprep.subr.bf16.mxu0 0
    %300 = vmatpush1.bf16.msra.mxu0 0
    %301 = vmatprep.subr.bf16.mxu0 0
    %302 = vmatpush1.bf16.msra.mxu0 0
    %303 = vmatprep.subr.bf16.mxu0 0
    %304 = vmatpush1.bf16.msra.mxu0 0
    %305 = vmatprep.subr.bf16.mxu0 0
    %306 = vmatpush1.bf16.msra.mxu0 0
    %307 = vmatprep.subr.bf16.mxu0 0
    %308 = vmatpush1.bf16.msra.mxu0 0
    %309 = vmatprep.subr.bf16.mxu0 0
    %310 = vmatpush1.bf16.msra.mxu0 0
    %311 = vmatprep.subr.bf16.mxu0 0
    %312 = vmatpush1.bf16.msra.mxu0 0
    %313 = vmatprep.subr.bf16.mxu0 0
    %314 = vmatpush1.bf16.msra.mxu0 0
    %315 = vmatprep.mubr.bf16.mxu0 0
    %316 = vmatmul.mubr.bf16.gmra.mrb[0].mxu0 %v187
    %v317 = vpop.f32.mrb[0].mxu0
    %v318 = vadd.f32 0.0, %v317
    %v319 = vpop.f32.mrb[0].mxu0
    %v320 = vadd.f32 0.0, %v319
    %v321 = vpop.f32.mrb[0].mxu0
    %v322 = vadd.f32 0.0, %v321
    %v323 = vpop.f32.mrb[0].mxu0
    %v324 = vadd.f32 0.0, %v323
    %325 = vmatprep.mubr.bf16.mxu0 0
    %326 = vmatmul.mubr.bf16.gmra.mrb[0].mxu0 %v188
    %v327 = vpop.f32.mrb[0].mxu0
    %v328 = vadd.f32 0.0, %v327
    %v329 = vpop.f32.mrb[0].mxu0
    %v330 = vadd.f32 0.0, %v329
    %v331 = vpop.f32.mrb[0].mxu0
    %v332 = vadd.f32 0.0, %v331
    %v333 = vpop.f32.mrb[0].mxu0
    %v334 = vadd.f32 0.0, %v333
    %335 = vmatprep.mubr.bf16.mxu0 0
    %336 = vmatmul.mubr.bf16.gmra.mrb[0].mxu0 %v189
    %v337 = vpop.f32.mrb[0].mxu0
    %v338 = vadd.f32 0.0, %v337
    %v339 = vpop.f32.mrb[0].mxu0
    %v340 = vadd.f32 0.0, %v339
    %v341 = vpop.f32.mrb[0].mxu0
    %v342 = vadd.f32 0.0, %v341
    %v343 = vpop.f32.mrb[0].mxu0
    %v344 = vadd.f32 0.0, %v343
    %345 = vmatprep.mubr.bf16.mxu0 0
    %346 = vmatmul.mubr.bf16.gmra.mrb[0].mxu0 %v190
    %v347 = vpop.f32.mrb[0].mxu0
    %v348 = vadd.f32 0.0, %v347
    %v349 = vpop.f32.mrb[0].mxu0
    %v350 = vadd.f32 0.0, %v349
    %v351 = vpop.f32.mrb[0].mxu0
    %v352 = vadd.f32 0.0, %v351
    %v353 = vpop.f32.mrb[0].mxu0
    %v354 = vadd.f32 0.0, %v353
    %355 = vmatprep.mubr.bf16.mxu0 0
    %356 = vmatmul.mubr.bf16.gmra.mrb[0].mxu0 %v191
    %v357 = vpop.f32.mrb[0].mxu0
    %v358 = vadd.f32 0.0, %v357
    %v359 = vpop.f32.mrb[0].mxu0
    %v360 = vadd.f32 0.0, %v359
    %v361 = vpop.f32.mrb[0].mxu0
    %v362 = vadd.f32 0.0, %v361
    %v363 = vpop.f32.mrb[0].mxu0
    %v364 = vadd.f32 0.0, %v363
    %365 = vmatprep.mubr.bf16.mxu0 0
    %366 = vmatmul.mubr.bf16.gmra.mrb[0].mxu0 %v192
    %v367 = vpop.f32.mrb[0].mxu0
    %v368 = vadd.f32 0.0, %v367
    %v369 = vpop.f32.mrb[0].mxu0
    %v370 = vadd.f32 0.0, %v369
    %v371 = vpop.f32.mrb[0].mxu0
    %v372 = vadd.f32 0.0, %v371
    %v373 = vpop.f32.mrb[0].mxu0
    %v374 = vadd.f32 0.0, %v373
    %375 = vmatprep.mubr.bf16.mxu0 0
    %376 = vmatmul.mubr.bf16.gmra.mrb[0].mxu0 %v193
    %v377 = vpop.f32.mrb[0].mxu0
    %v378 = vadd.f32 0.0, %v377
    %v379 = vpop.f32.mrb[0].mxu0
    %v380 = vadd.f32 0.0, %v379
    %v381 = vpop.f32.mrb[0].mxu0
    %v382 = vadd.f32 0.0, %v381
    %v383 = vpop.f32.mrb[0].mxu0
    %v384 = vadd.f32 0.0, %v383
    %385 = vmatprep.mubr.bf16.mxu0 0
    %386 = vmatmul.mubr.bf16.gmra.mrb[0].mxu0 %v194
    %v387 = vpop.f32.mrb[0].mxu0
    %v388 = vadd.f32 0.0, %v387
    %v389 = vpop.f32.mrb[0].mxu0
    %v390 = vadd.f32 0.0, %v389
    %v391 = vpop.f32.mrb[0].mxu0
    %v392 = vadd.f32 0.0, %v391
    %v393 = vpop.f32.mrb[0].mxu0
    %v394 = vadd.f32 0.0, %v393
    %395 = vdwg.mxu0
    %v396 = vadd.f32 %v91, %v318
    %v397 = vadd.f32 %v92, %v320
    %v398 = vadd.f32 %v93, %v322
    %v399 = vadd.f32 %v94, %v324
    %v400 = vadd.f32 %v95, %v328
    %v401 = vadd.f32 %v96, %v330
    %v402 = vadd.f32 %v97, %v332
    %v403 = vadd.f32 %v98, %v334
    %v404 = vadd.f32 %v99, %v338
    %v405 = vadd.f32 %v100, %v340
    %v406 = vadd.f32 %v101, %v342
    %v407 = vadd.f32 %v102, %v344
    %v408 = vadd.f32 %v103, %v348
    %v409 = vadd.f32 %v104, %v350
    %v410 = vadd.f32 %v105, %v352
    %v411 = vadd.f32 %v106, %v354
    %v412 = vadd.f32 %v107, %v358
    %v413 = vadd.f32 %v108, %v360
    %v414 = vadd.f32 %v109, %v362
    %v415 = vadd.f32 %v110, %v364
    %v416 = vadd.f32 %v111, %v368
    %v417 = vadd.f32 %v112, %v370
    %v418 = vadd.f32 %v113, %v372
    %v419 = vadd.f32 %v114, %v374
    %v420 = vadd.f32 %v115, %v378
    %v421 = vadd.f32 %v116, %v380
    %v422 = vadd.f32 %v117, %v382
    %v423 = vadd.f32 %v118, %v384
    %v424 = vadd.f32 %v119, %v388
    %v425 = vadd.f32 %v120, %v390
    %v426 = vadd.f32 %v121, %v392
    %v427 = vadd.f32 %v122, %v394
    %428 = vst [vmem:[#allocation2] sm:$0xff] %v396
    %429 = vst [vmem:[#allocation2 + $0x8] sm:$0xff] %v397
    %430 = vst [vmem:[#allocation2 + $0x10] sm:$0xff] %v398
    %431 = vst [vmem:[#allocation2 + $0x18] sm:$0xff] %v399
    %432 = vst [vmem:[#allocation2 + $0x20] sm:$0xff] %v400
    %433 = vst [vmem:[#allocation2 + $0x28] sm:$0xff] %v401
    %434 = vst [vmem:[#allocation2 + $0x30] sm:$0xff] %v402
    %435 = vst [vmem:[#allocation2 + $0x38] sm:$0xff] %v403
    %436 = vst [vmem:[#allocation2 + $0x40] sm:$0xff] %v404
    %437 = vst [vmem:[#allocation2 + $0x48] sm:$0xff] %v405
    %438 = vst [vmem:[#allocation2 + $0x50] sm:$0xff] %v406
    %439 = vst [vmem:[#allocation2 + $0x58] sm:$0xff] %v407
    %440 = vst [vmem:[#allocation2 + $0x60] sm:$0xff] %v408
    %441 = vst [vmem:[#allocation2 + $0x68] sm:$0xff] %v409
    %442 = vst [vmem:[#allocation2 + $0x70] sm:$0xff] %v410
    %443 = vst [vmem:[#allocation2 + $0x78] sm:$0xff] %v411
    %444 = vst [vmem:[#allocation2 + $0x80] sm:$0xff] %v412
    %445 = vst [vmem:[#allocation2 + $0x88] sm:$0xff] %v413
    %446 = vst [vmem:[#allocation2 + $0x90] sm:$0xff] %v414
    %447 = vst [vmem:[#allocation2 + $0x98] sm:$0xff] %v415
    %448 = vst [vmem:[#allocation2 + $0xa0] sm:$0xff] %v416
    %449 = vst [vmem:[#allocation2 + $0xa8] sm:$0xff] %v417
    %450 = vst [vmem:[#allocation2 + $0xb0] sm:$0xff] %v418
    %451 = vst [vmem:[#allocation2 + $0xb8] sm:$0xff] %v419
    %452 = vst [vmem:[#allocation2 + $0xc0] sm:$0xff] %v420
    %453 = vst [vmem:[#allocation2 + $0xc8] sm:$0xff] %v421
    %454 = vst [vmem:[#allocation2 + $0xd0] sm:$0xff] %v422
    %455 = vst [vmem:[#allocation2 + $0xd8] sm:$0xff] %v423
    %456 = vst [vmem:[#allocation2 + $0xe0] sm:$0xff] %v424
    %457 = vst [vmem:[#allocation2 + $0xe8] sm:$0xff] %v425
    %458 = vst [vmem:[#allocation2 + $0xf0] sm:$0xff] %v426
    %459 = vst [vmem:[#allocation2 + $0xf8] sm:$0xff] %v427
    // Predicated region
    $region30: #{decoder_rnn_forward.5} parent=1 // pred_check
      %p460 = pneg %p55
    $region31: #{decoder_rnn_forward.5} parent=1 // pred_check_branch
      %462 = sbr.rel (%p460) target = $region33
    $region32: #{decoder_rnn_forward.5} parent=1 // pred_region
      %v463 = vld [vmem:[#allocation2] sm:$0xff]
      %v464 = vld [vmem:[#allocation2 + $0x8] sm:$0xff]
      %v465 = vld [vmem:[#allocation2 + $0x10] sm:$0xff]
      %v466 = vld [vmem:[#allocation2 + $0x18] sm:$0xff]
      %v467 = vld [vmem:[#allocation2 + $0x20] sm:$0xff]
      %v468 = vld [vmem:[#allocation2 + $0x28] sm:$0xff]
      %v469 = vld [vmem:[#allocation2 + $0x30] sm:$0xff]
      %v470 = vld [vmem:[#allocation2 + $0x38] sm:$0xff]
      %v471 = vld [vmem:[#allocation2 + $0x40] sm:$0xff]
      %v472 = vld [vmem:[#allocation2 + $0x48] sm:$0xff]
      %v473 = vld [vmem:[#allocation2 + $0x50] sm:$0xff]
      %v474 = vld [vmem:[#allocation2 + $0x58] sm:$0xff]
      %v475 = vld [vmem:[#allocation2 + $0x60] sm:$0xff]
      %v476 = vld [vmem:[#allocation2 + $0x68] sm:$0xff]
      %v477 = vld [vmem:[#allocation2 + $0x70] sm:$0xff]
      %v478 = vld [vmem:[#allocation2 + $0x78] sm:$0xff]
      %v479 = vld [vmem:[#allocation2 + $0x80] sm:$0xff]
      %v480 = vld [vmem:[#allocation2 + $0x88] sm:$0xff]
      %v481 = vld [vmem:[#allocation2 + $0x90] sm:$0xff]
      %v482 = vld [vmem:[#allocation2 + $0x98] sm:$0xff]
      %v483 = vld [vmem:[#allocation2 + $0xa0] sm:$0xff]
      %v484 = vld [vmem:[#allocation2 + $0xa8] sm:$0xff]
      %v485 = vld [vmem:[#allocation2 + $0xb0] sm:$0xff]
      %v486 = vld [vmem:[#allocation2 + $0xb8] sm:$0xff]
      %v487 = vld [vmem:[#allocation2 + $0xc0] sm:$0xff]
      %v488 = vld [vmem:[#allocation2 + $0xc8] sm:$0xff]
      %v489 = vld [vmem:[#allocation2 + $0xd0] sm:$0xff]
      %v490 = vld [vmem:[#allocation2 + $0xd8] sm:$0xff]
      %v491 = vld [vmem:[#allocation2 + $0xe0] sm:$0xff]
      %v492 = vld [vmem:[#allocation2 + $0xe8] sm:$0xff]
      %v493 = vld [vmem:[#allocation2 + $0xf0] sm:$0xff]
      %v494 = vld [vmem:[#allocation2 + $0xf8] sm:$0xff]
      %v495 = vld [vmem:[#allocation8] sm:$0x3]
      %v497 = vlaneseq
      %v498 = vshrl.u32 %v497, 7
      %v499 = vsub.s32 0, %v498
      %v500 = vrot.slane %v495, %v499
      %v501 = vlaneseq
      %v502 = vshrl.u32 %v501, 7
      %v503 = vsub.s32 1, %v502
      %v504 = vrot.slane %v495, %v503
      %v507 = vadd.f32 %v463, %v500
      %v508 = vadd.f32 %v464, %v504
      %v509 = vadd.f32 %v465, %v500
      %v510 = vadd.f32 %v466, %v504
      %v511 = vadd.f32 %v467, %v500
      %v512 = vadd.f32 %v468, %v504
      %v513 = vadd.f32 %v469, %v500
      %v514 = vadd.f32 %v470, %v504
      %v515 = vadd.f32 %v471, %v500
      %v516 = vadd.f32 %v472, %v504
      %v517 = vadd.f32 %v473, %v500
      %v518 = vadd.f32 %v474, %v504
      %v519 = vadd.f32 %v475, %v500
      %v520 = vadd.f32 %v476, %v504
      %v521 = vadd.f32 %v477, %v500
      %v522 = vadd.f32 %v478, %v504
      %v523 = vadd.f32 %v479, %v500
      %v524 = vadd.f32 %v480, %v504
      %v525 = vadd.f32 %v481, %v500
      %v526 = vadd.f32 %v482, %v504
      %v527 = vadd.f32 %v483, %v500
      %v528 = vadd.f32 %v484, %v504
      %v529 = vadd.f32 %v485, %v500
      %v530 = vadd.f32 %v486, %v504
      %v531 = vadd.f32 %v487, %v500
      %v532 = vadd.f32 %v488, %v504
      %v533 = vadd.f32 %v489, %v500
      %v534 = vadd.f32 %v490, %v504
      %v535 = vadd.f32 %v491, %v500
      %v536 = vadd.f32 %v492, %v504
      %v537 = vadd.f32 %v493, %v500
      %v538 = vadd.f32 %v494, %v504
      %539 = vst [vmem:[#allocation9] sm:$0xff] %v507
      %540 = vst [vmem:[#allocation9 + $0x8] sm:$0xff] %v508
      %541 = vst [vmem:[#allocation9 + $0x10] sm:$0xff] %v509
      %542 = vst [vmem:[#allocation9 + $0x18] sm:$0xff] %v510
      %543 = vst [vmem:[#allocation9 + $0x20] sm:$0xff] %v511
      %544 = vst [vmem:[#allocation9 + $0x28] sm:$0xff] %v512
      %545 = vst [vmem:[#allocation9 + $0x30] sm:$0xff] %v513
      %546 = vst [vmem:[#allocation9 + $0x38] sm:$0xff] %v514
      %547 = vst [vmem:[#allocation9 + $0x40] sm:$0xff] %v515
      %548 = vst [vmem:[#allocation9 + $0x48] sm:$0xff] %v516
      %549 = vst [vmem:[#allocation9 + $0x50] sm:$0xff] %v517
      %550 = vst [vmem:[#allocation9 + $0x58] sm:$0xff] %v518
      %551 = vst [vmem:[#allocation9 + $0x60] sm:$0xff] %v519
      %552 = vst [vmem:[#allocation9 + $0x68] sm:$0xff] %v520
      %553 = vst [vmem:[#allocation9 + $0x70] sm:$0xff] %v521
      %554 = vst [vmem:[#allocation9 + $0x78] sm:$0xff] %v522
      %555 = vst [vmem:[#allocation9 + $0x80] sm:$0xff] %v523
      %556 = vst [vmem:[#allocation9 + $0x88] sm:$0xff] %v524
      %557 = vst [vmem:[#allocation9 + $0x90] sm:$0xff] %v525
      %558 = vst [vmem:[#allocation9 + $0x98] sm:$0xff] %v526
      %559 = vst [vmem:[#allocation9 + $0xa0] sm:$0xff] %v527
      %560 = vst [vmem:[#allocation9 + $0xa8] sm:$0xff] %v528
      %561 = vst [vmem:[#allocation9 + $0xb0] sm:$0xff] %v529
      %562 = vst [vmem:[#allocation9 + $0xb8] sm:$0xff] %v530
      %563 = vst [vmem:[#allocation9 + $0xc0] sm:$0xff] %v531
      %564 = vst [vmem:[#allocation9 + $0xc8] sm:$0xff] %v532
      %565 = vst [vmem:[#allocation9 + $0xd0] sm:$0xff] %v533
      %566 = vst [vmem:[#allocation9 + $0xd8] sm:$0xff] %v534
      %567 = vst [vmem:[#allocation9 + $0xe0] sm:$0xff] %v535
      %568 = vst [vmem:[#allocation9 + $0xe8] sm:$0xff] %v536
      %569 = vst [vmem:[#allocation9 + $0xf0] sm:$0xff] %v537
      %570 = vst [vmem:[#allocation9 + $0xf8] sm:$0xff] %v538
    $region33: #{decoder_rnn_forward.5} parent=1 // pred_fallthru
      _
    // Predicated region
    $region34: #{decoder_rnn_forward.5} parent=1 // pred_check
      _
    $region35: #{decoder_rnn_forward.5} parent=1 // pred_check_branch
      %572 = sbr.rel (0) target = $region37
    $region36: #{decoder_rnn_forward.5} parent=1 // pred_region
      %s574 = ssub.s32 4096, 4096
      %575 = vsyncadd [#allocation5], %s574
      %s576 = sshll.u32 [#allocation9], 4
      %s577 = int_to_ptr.vmem [resolvable:$true] %s576
      %582 = dma.vmem_to_hbm [thread:$0]  %s577, 4096, %s3, [#allocation5], 256, 256, 16
    $region37: #{decoder_rnn_forward.5} parent=1 // pred_fallthru
      _
    // Predicated region
    $region38: #{decoder_rnn_forward.5} parent=1 // pred_check
      _
    $region39: #{decoder_rnn_forward.5} parent=1 // pred_check_branch
      %584 = sbr.rel (0) target = $region41
    $region40: #{decoder_rnn_forward.5} parent=1 // pred_region
      %585 = dma.done [#allocation5], 4096
    $region41: #{decoder_rnn_forward.5} parent=1 // pred_fallthru
      _
    %586 = vsyncpa [#allocation4], 1
    %587 = vsyncpa [#allocation7], 1
    %588 = vsyncpa [#allocation5], 1

// kernel: decoder_rnn_forward.3
$region0: #{decoder_rnn_forward.3}
  #allocation0 [shape = 'u32[]', space=smem, size = 0x4, offset = 0x4, fixed_abs, tag = 'smem constant byte address 0x4 - core index']
  #allocation1 [shape = 'u32[144,128]{1,0:T(1,128)}', space=vmem, size = 0x12000, scoped, tag = 'internal scratch']
  #allocation2 [shape = 'f32[128,512]{1,0:T(8,128)}', space=vmem, size = 0x40000, scoped, tag = 'scratch operand']
  %s0 = inlined_call_operand.hbm [shape: bf16[128,128], index: 0, kind: input, shape index: {}]
  %s1 = inlined_call_operand.hbm [shape: bf16[128,512], index: 1, kind: input, shape index: {}]
  %s2 = inlined_call_operand.hbm [shape: f32[1,512], index: 2, kind: input, shape index: {}]
  %s3 = inlined_call_operand.hbm [shape: f32[128,512], index: 3, kind: output, shape index: {}]
  %s4 = sld [smem:[#allocation0]]
  $region42: #{decoder_rnn_forward.3} parent=0
    _
  %s6 = ssub.s32 1, %s4
  %s7 = scalar_select 0, %s6, %s4
  $region1: #{decoder_rnn_forward.3} parent=0
    #allocation3 [shape = 'u8[32768]{0}', space=vmem, size = 0x8000, scoped, tag = 'input window, operand 0, single buffered']
    #allocation4 [shape = 's32[1]{0}', space=sflag, size = 0x4, scoped, tag = 'scoped memory for decoder_rnn_forward.3']
    #allocation5 [shape = 's32[1]{0}', space=sflag, size = 0x4, scoped, tag = 'scoped memory for decoder_rnn_forward.3']
    #allocation6 [shape = 'u8[131072]{0}', space=vmem, size = 0x20000, scoped, tag = 'input window, operand 1, single buffered']
    #allocation7 [shape = 's32[1]{0}', space=sflag, size = 0x4, scoped, tag = 'scoped memory for decoder_rnn_forward.3']
    #allocation8 [shape = 'u8[2048]{0}', space=vmem, size = 0x800, scoped, tag = 'input window, operand 2, single buffered']
    #allocation9 [shape = 'u8[262144]{0}', space=vmem, size = 0x40000, scoped, tag = 'output window, operand 0, single buffered']
    %8 = vsyncpa [#allocation4], 0
    %9 = vsyncpa [#allocation7], 0
    %10 = vsyncpa [#allocation5], 0
    // Predicated region
    $region2: #{decoder_rnn_forward.3} parent=1 // pred_check
      _
    $region3: #{decoder_rnn_forward.3} parent=1 // pred_check_branch
      %12 = sbr.rel (0) target = $region5
    $region4: #{decoder_rnn_forward.3} parent=1 // pred_region
      %s14 = ssub.s32 1024, 1024
      %15 = vsyncadd [#allocation4], %s14
      %s16 = sshll.u32 [#allocation3], 4
      %s17 = int_to_ptr.vmem [resolvable:$true] %s16
      %22 = dma.hbm_to_vmem [thread:$0]  %s0, 1024, %s17, [#allocation4], 64, 64, 4
    $region5: #{decoder_rnn_forward.3} parent=1 // pred_fallthru
      _
    // Predicated region
    $region6: #{decoder_rnn_forward.3} parent=1 // pred_check
      _
    $region7: #{decoder_rnn_forward.3} parent=1 // pred_check_branch
      %24 = sbr.rel (0) target = $region9
    $region8: #{decoder_rnn_forward.3} parent=1 // pred_region
      %s26 = ssub.s32 4096, 4096
      %27 = vsyncadd [#allocation7], %s26
      %s28 = sshll.u32 [#allocation6], 4
      %s29 = int_to_ptr.vmem [resolvable:$true] %s28
      %34 = dma.hbm_to_vmem [thread:$0]  %s1, 4096, %s29, [#allocation7], 256, 256, 16
    $region9: #{decoder_rnn_forward.3} parent=1 // pred_fallthru
      _
    // Predicated region
    $region10: #{decoder_rnn_forward.3} parent=1 // pred_check
      _
    $region11: #{decoder_rnn_forward.3} parent=1 // pred_check_branch
      %36 = sbr.rel (0) target = $region13
    $region12: #{decoder_rnn_forward.3} parent=1 // pred_region
      %s38 = ssub.s32 64, 64
      %39 = vsyncadd [#allocation7], %s38
      %s41 = sshll.u32 [#allocation8], 4
      %s42 = int_to_ptr.vmem [resolvable:$true] %s41
      %44 = dma.hbm_to_vmem [thread:$0]  %s2, 64, %s42, [#allocation7]
    $region13: #{decoder_rnn_forward.3} parent=1 // pred_fallthru
      _
    // Predicated region
    $region14: #{decoder_rnn_forward.3} parent=1 // pred_check
      _
    $region15: #{decoder_rnn_forward.3} parent=1 // pred_check_branch
      %46 = sbr.rel (0) target = $region17
    $region16: #{decoder_rnn_forward.3} parent=1 // pred_region
      %47 = dma.done [#allocation4], 1024
    $region17: #{decoder_rnn_forward.3} parent=1 // pred_fallthru
      _
    // Predicated region
    $region18: #{decoder_rnn_forward.3} parent=1 // pred_check
      _
    $region19: #{decoder_rnn_forward.3} parent=1 // pred_check_branch
      %49 = sbr.rel (0) target = $region21
    $region20: #{decoder_rnn_forward.3} parent=1 // pred_region
      %50 = dma.done [#allocation7], 4096
    $region21: #{decoder_rnn_forward.3} parent=1 // pred_fallthru
      _
    // Predicated region
    $region22: #{decoder_rnn_forward.3} parent=1 // pred_check
      _
    $region23: #{decoder_rnn_forward.3} parent=1 // pred_check_branch
      %52 = sbr.rel (0) target = $region25
    $region24: #{decoder_rnn_forward.3} parent=1 // pred_region
      %53 = dma.done [#allocation7], 64
    $region25: #{decoder_rnn_forward.3} parent=1 // pred_fallthru
      _
    %p55 = scmp.eq.s32.totalorder 0, 0
    // Predicated region
    $region26: #{decoder_rnn_forward.3} parent=1 // pred_check
      %p56 = pneg %p55
    $region27: #{decoder_rnn_forward.3} parent=1 // pred_check_branch
      %58 = sbr.rel (%p56) target = $region29
    $region28: #{decoder_rnn_forward.3} parent=1 // pred_region
      %59 = vst [vmem:[#allocation2] sm:$0xff] 0.0
      %60 = vst [vmem:[#allocation2 + $0x8] sm:$0xff] 0.0
      %61 = vst [vmem:[#allocation2 + $0x10] sm:$0xff] 0.0
      %62 = vst [vmem:[#allocation2 + $0x18] sm:$0xff] 0.0
      %63 = vst [vmem:[#allocation2 + $0x20] sm:$0xff] 0.0
      %64 = vst [vmem:[#allocation2 + $0x28] sm:$0xff] 0.0
      %65 = vst [vmem:[#allocation2 + $0x30] sm:$0xff] 0.0
      %66 = vst [vmem:[#allocation2 + $0x38] sm:$0xff] 0.0
      %67 = vst [vmem:[#allocation2 + $0x40] sm:$0xff] 0.0
      %68 = vst [vmem:[#allocation2 + $0x48] sm:$0xff] 0.0
      %69 = vst [vmem:[#allocation2 + $0x50] sm:$0xff] 0.0
      %70 = vst [vmem:[#allocation2 + $0x58] sm:$0xff] 0.0
      %71 = vst [vmem:[#allocation2 + $0x60] sm:$0xff] 0.0
      %72 = vst [vmem:[#allocation2 + $0x68] sm:$0xff] 0.0
      %73 = vst [vmem:[#allocation2 + $0x70] sm:$0xff] 0.0
      %74 = vst [vmem:[#allocation2 + $0x78] sm:$0xff] 0.0
      %75 = vst [vmem:[#allocation2 + $0x80] sm:$0xff] 0.0
      %76 = vst [vmem:[#allocation2 + $0x88] sm:$0xff] 0.0
      %77 = vst [vmem:[#allocation2 + $0x90] sm:$0xff] 0.0
      %78 = vst [vmem:[#allocation2 + $0x98] sm:$0xff] 0.0
      %79 = vst [vmem:[#allocation2 + $0xa0] sm:$0xff] 0.0
      %80 = vst [vmem:[#allocation2 + $0xa8] sm:$0xff] 0.0
      %81 = vst [vmem:[#allocation2 + $0xb0] sm:$0xff] 0.0
      %82 = vst [vmem:[#allocation2 + $0xb8] sm:$0xff] 0.0
      %83 = vst [vmem:[#allocation2 + $0xc0] sm:$0xff] 0.0
      %84 = vst [vmem:[#allocation2 + $0xc8] sm:$0xff] 0.0
      %85 = vst [vmem:[#allocation2 + $0xd0] sm:$0xff] 0.0
      %86 = vst [vmem:[#allocation2 + $0xd8] sm:$0xff] 0.0
      %87 = vst [vmem:[#allocation2 + $0xe0] sm:$0xff] 0.0
      %88 = vst [vmem:[#allocation2 + $0xe8] sm:$0xff] 0.0
      %89 = vst [vmem:[#allocation2 + $0xf0] sm:$0xff] 0.0
      %90 = vst [vmem:[#allocation2 + $0xf8] sm:$0xff] 0.0
      %91 = vst [vmem:[#allocation2 + $0x100] sm:$0xff] 0.0
      %92 = vst [vmem:[#allocation2 + $0x108] sm:$0xff] 0.0
      %93 = vst [vmem:[#allocation2 + $0x110] sm:$0xff] 0.0
      %94 = vst [vmem:[#allocation2 + $0x118] sm:$0xff] 0.0
      %95 = vst [vmem:[#allocation2 + $0x120] sm:$0xff] 0.0
      %96 = vst [vmem:[#allocation2 + $0x128] sm:$0xff] 0.0
      %97 = vst [vmem:[#allocation2 + $0x130] sm:$0xff] 0.0
      %98 = vst [vmem:[#allocation2 + $0x138] sm:$0xff] 0.0
      %99 = vst [vmem:[#allocation2 + $0x140] sm:$0xff] 0.0
      %100 = vst [vmem:[#allocation2 + $0x148] sm:$0xff] 0.0
      %101 = vst [vmem:[#allocation2 + $0x150] sm:$0xff] 0.0
      %102 = vst [vmem:[#allocation2 + $0x158] sm:$0xff] 0.0
      %103 = vst [vmem:[#allocation2 + $0x160] sm:$0xff] 0.0
      %104 = vst [vmem:[#allocation2 + $0x168] sm:$0xff] 0.0
      %105 = vst [vmem:[#allocation2 + $0x170] sm:$0xff] 0.0
      %106 = vst [vmem:[#allocation2 + $0x178] sm:$0xff] 0.0
      %107 = vst [vmem:[#allocation2 + $0x180] sm:$0xff] 0.0
      %108 = vst [vmem:[#allocation2 + $0x188] sm:$0xff] 0.0
      %109 = vst [vmem:[#allocation2 + $0x190] sm:$0xff] 0.0
      %110 = vst [vmem:[#allocation2 + $0x198] sm:$0xff] 0.0
      %111 = vst [vmem:[#allocation2 + $0x1a0] sm:$0xff] 0.0
      %112 = vst [vmem:[#allocation2 + $0x1a8] sm:$0xff] 0.0
      %113 = vst [vmem:[#allocation2 + $0x1b0] sm:$0xff] 0.0
      %114 = vst [vmem:[#allocation2 + $0x1b8] sm:$0xff] 0.0
      %115 = vst [vmem:[#allocation2 + $0x1c0] sm:$0xff] 0.0
      %116 = vst [vmem:[#allocation2 + $0x1c8] sm:$0xff] 0.0
      %117 = vst [vmem:[#allocation2 + $0x1d0] sm:$0xff] 0.0
      %118 = vst [vmem:[#allocation2 + $0x1d8] sm:$0xff] 0.0
      %119 = vst [vmem:[#allocation2 + $0x1e0] sm:$0xff] 0.0
      %120 = vst [vmem:[#allocation2 + $0x1e8] sm:$0xff] 0.0
      %121 = vst [vmem:[#allocation2 + $0x1f0] sm:$0xff] 0.0
      %122 = vst [vmem:[#allocation2 + $0x1f8] sm:$0xff] 0.0
    $region29: #{decoder_rnn_forward.3} parent=1 // pred_fallthru
      _
    %v123 = vld [vmem:[#allocation2] sm:$0xff]
    %v124 = vld [vmem:[#allocation2 + $0x8] sm:$0xff]
    %v125 = vld [vmem:[#allocation2 + $0x10] sm:$0xff]
    %v126 = vld [vmem:[#allocation2 + $0x18] sm:$0xff]
    %v127 = vld [vmem:[#allocation2 + $0x20] sm:$0xff]
    %v128 = vld [vmem:[#allocation2 + $0x28] sm:$0xff]
    %v129 = vld [vmem:[#allocation2 + $0x30] sm:$0xff]
    %v130 = vld [vmem:[#allocation2 + $0x38] sm:$0xff]
    %v131 = vld [vmem:[#allocation2 + $0x40] sm:$0xff]
    %v132 = vld [vmem:[#allocation2 + $0x48] sm:$0xff]
    %v133 = vld [vmem:[#allocation2 + $0x50] sm:$0xff]
    %v134 = vld [vmem:[#allocation2 + $0x58] sm:$0xff]
    %v135 = vld [vmem:[#allocation2 + $0x60] sm:$0xff]
    %v136 = vld [vmem:[#allocation2 + $0x68] sm:$0xff]
    %v137 = vld [vmem:[#allocation2 + $0x70] sm:$0xff]
    %v138 = vld [vmem:[#allocation2 + $0x78] sm:$0xff]
    %v139 = vld [vmem:[#allocation2 + $0x80] sm:$0xff]
    %v140 = vld [vmem:[#allocation2 + $0x88] sm:$0xff]
    %v141 = vld [vmem:[#allocation2 + $0x90] sm:$0xff]
    %v142 = vld [vmem:[#allocation2 + $0x98] sm:$0xff]
    %v143 = vld [vmem:[#allocation2 + $0xa0] sm:$0xff]
    %v144 = vld [vmem:[#allocation2 + $0xa8] sm:$0xff]
    %v145 = vld [vmem:[#allocation2 + $0xb0] sm:$0xff]
    %v146 = vld [vmem:[#allocation2 + $0xb8] sm:$0xff]
    %v147 = vld [vmem:[#allocation2 + $0xc0] sm:$0xff]
    %v148 = vld [vmem:[#allocation2 + $0xc8] sm:$0xff]
    %v149 = vld [vmem:[#allocation2 + $0xd0] sm:$0xff]
    %v150 = vld [vmem:[#allocation2 + $0xd8] sm:$0xff]
    %v151 = vld [vmem:[#allocation2 + $0xe0] sm:$0xff]
    %v152 = vld [vmem:[#allocation2 + $0xe8] sm:$0xff]
    %v153 = vld [vmem:[#allocation2 + $0xf0] sm:$0xff]
    %v154 = vld [vmem:[#allocation2 + $0xf8] sm:$0xff]
    %v155 = vld [vmem:[#allocation2 + $0x100] sm:$0xff]
    %v156 = vld [vmem:[#allocation2 + $0x108] sm:$0xff]
    %v157 = vld [vmem:[#allocation2 + $0x110] sm:$0xff]
    %v158 = vld [vmem:[#allocation2 + $0x118] sm:$0xff]
    %v159 = vld [vmem:[#allocation2 + $0x120] sm:$0xff]
    %v160 = vld [vmem:[#allocation2 + $0x128] sm:$0xff]
    %v161 = vld [vmem:[#allocation2 + $0x130] sm:$0xff]
    %v162 = vld [vmem:[#allocation2 + $0x138] sm:$0xff]
    %v163 = vld [vmem:[#allocation2 + $0x140] sm:$0xff]
    %v164 = vld [vmem:[#allocation2 + $0x148] sm:$0xff]
    %v165 = vld [vmem:[#allocation2 + $0x150] sm:$0xff]
    %v166 = vld [vmem:[#allocation2 + $0x158] sm:$0xff]
    %v167 = vld [vmem:[#allocation2 + $0x160] sm:$0xff]
    %v168 = vld [vmem:[#allocation2 + $0x168] sm:$0xff]
    %v169 = vld [vmem:[#allocation2 + $0x170] sm:$0xff]
    %v170 = vld [vmem:[#allocation2 + $0x178] sm:$0xff]
    %v171 = vld [vmem:[#allocation2 + $0x180] sm:$0xff]
    %v172 = vld [vmem:[#allocation2 + $0x188] sm:$0xff]
    %v173 = vld [vmem:[#allocation2 + $0x190] sm:$0xff]
    %v174 = vld [vmem:[#allocation2 + $0x198] sm:$0xff]
    %v175 = vld [vmem:[#allocation2 + $0x1a0] sm:$0xff]
    %v176 = vld [vmem:[#allocation2 + $0x1a8] sm:$0xff]
    %v177 = vld [vmem:[#allocation2 + $0x1b0] sm:$0xff]
    %v178 = vld [vmem:[#allocation2 + $0x1b8] sm:$0xff]
    %v179 = vld [vmem:[#allocation2 + $0x1c0] sm:$0xff]
    %v180 = vld [vmem:[#allocation2 + $0x1c8] sm:$0xff]
    %v181 = vld [vmem:[#allocation2 + $0x1d0] sm:$0xff]
    %v182 = vld [vmem:[#allocation2 + $0x1d8] sm:$0xff]
    %v183 = vld [vmem:[#allocation2 + $0x1e0] sm:$0xff]
    %v184 = vld [vmem:[#allocation2 + $0x1e8] sm:$0xff]
    %v185 = vld [vmem:[#allocation2 + $0x1f0] sm:$0xff]
    %v186 = vld [vmem:[#allocation2 + $0x1f8] sm:$0xff]
    %v187 = vld [vmem:[#allocation3] sm:$0xf]
    %v188 = vld [vmem:[#allocation3 + $0x4] sm:$0xf]
    %v189 = vld [vmem:[#allocation3 + $0x8] sm:$0xf]
    %v190 = vld [vmem:[#allocation3 + $0xc] sm:$0xf]
    %v191 = vld [vmem:[#allocation3 + $0x10] sm:$0xf]
    %v192 = vld [vmem:[#allocation3 + $0x14] sm:$0xf]
    %v193 = vld [vmem:[#allocation3 + $0x18] sm:$0xf]
    %v194 = vld [vmem:[#allocation3 + $0x1c] sm:$0xf]
    %v195 = vld [vmem:[#allocation3 + $0x20] sm:$0xf]
    %v196 = vld [vmem:[#allocation3 + $0x24] sm:$0xf]
    %v197 = vld [vmem:[#allocation3 + $0x28] sm:$0xf]
    %v198 = vld [vmem:[#allocation3 + $0x2c] sm:$0xf]
    %v199 = vld [vmem:[#allocation3 + $0x30] sm:$0xf]
    %v200 = vld [vmem:[#allocation3 + $0x34] sm:$0xf]
    %v201 = vld [vmem:[#allocation3 + $0x38] sm:$0xf]
    %v202 = vld [vmem:[#allocation3 + $0x3c] sm:$0xf]
    %v203 = vld [vmem:[#allocation6] sm:$0xff]
    %v204 = vld [vmem:[#allocation6 + $0x8] sm:$0xff]
    %v205 = vld [vmem:[#allocation6 + $0x10] sm:$0xff]
    %v206 = vld [vmem:[#allocation6 + $0x18] sm:$0xff]
    %v207 = vld [vmem:[#allocation6 + $0x20] sm:$0xff]
    %v208 = vld [vmem:[#allocation6 + $0x28] sm:$0xff]
    %v209 = vld [vmem:[#allocation6 + $0x30] sm:$0xff]
    %v210 = vld [vmem:[#allocation6 + $0x38] sm:$0xff]
    %v211 = vld [vmem:[#allocation6 + $0x40] sm:$0xff]
    %v212 = vld [vmem:[#allocation6 + $0x48] sm:$0xff]
    %v213 = vld [vmem:[#allocation6 + $0x50] sm:$0xff]
    %v214 = vld [vmem:[#allocation6 + $0x58] sm:$0xff]
    %v215 = vld [vmem:[#allocation6 + $0x60] sm:$0xff]
    %v216 = vld [vmem:[#allocation6 + $0x68] sm:$0xff]
    %v217 = vld [vmem:[#allocation6 + $0x70] sm:$0xff]
    %v218 = vld [vmem:[#allocation6 + $0x78] sm:$0xff]
    %v219 = vld [vmem:[#allocation6 + $0x80] sm:$0xff]
    %v220 = vld [vmem:[#allocation6 + $0x88] sm:$0xff]
    %v221 = vld [vmem:[#allocation6 + $0x90] sm:$0xff]
    %v222 = vld [vmem:[#allocation6 + $0x98] sm:$0xff]
    %v223 = vld [vmem:[#allocation6 + $0xa0] sm:$0xff]
    %v224 = vld [vmem:[#allocation6 + $0xa8] sm:$0xff]
    %v225 = vld [vmem:[#allocation6 + $0xb0] sm:$0xff]
    %v226 = vld [vmem:[#allocation6 + $0xb8] sm:$0xff]
    %v227 = vld [vmem:[#allocation6 + $0xc0] sm:$0xff]
    %v228 = vld [vmem:[#allocation6 + $0xc8] sm:$0xff]
    %v229 = vld [vmem:[#allocation6 + $0xd0] sm:$0xff]
    %v230 = vld [vmem:[#allocation6 + $0xd8] sm:$0xff]
    %v231 = vld [vmem:[#allocation6 + $0xe0] sm:$0xff]
    %v232 = vld [vmem:[#allocation6 + $0xe8] sm:$0xff]
    %v233 = vld [vmem:[#allocation6 + $0xf0] sm:$0xff]
    %v234 = vld [vmem:[#allocation6 + $0xf8] sm:$0xff]
    %v251 = vunpack.c.l.b16 %v187
    %v252 = vunpack.c.l.b16 %v188
    %v253 = vunpack.c.l.b16 %v189
    %v254 = vunpack.c.l.b16 %v190
    %v255 = vunpack.c.l.b16 %v191
    %v256 = vunpack.c.l.b16 %v192
    %v257 = vunpack.c.l.b16 %v193
    %v258 = vunpack.c.l.b16 %v194
    %v259 = vunpack.c.l.b16 %v195
    %v260 = vunpack.c.l.b16 %v196
    %v261 = vunpack.c.l.b16 %v197
    %v262 = vunpack.c.l.b16 %v198
    %v263 = vunpack.c.l.b16 %v199
    %v264 = vunpack.c.l.b16 %v200
    %v265 = vunpack.c.l.b16 %v201
    %v266 = vunpack.c.l.b16 %v202
    %v267 = vpack.c.b16 %v252, %v251
    %v268 = vpack.c.b16 %v254, %v253
    %v269 = vpack.c.b16 %v256, %v255
    %v270 = vpack.c.b16 %v258, %v257
    %v271 = vpack.c.b16 %v260, %v259
    %v272 = vpack.c.b16 %v262, %v261
    %v273 = vpack.c.b16 %v264, %v263
    %v274 = vpack.c.b16 %v266, %v265
    %v315 = vunpack.c.l.b16 %v203
    %v316 = vunpack.c.h.b16 %v203
    %v317 = vunpack.c.l.b16 %v204
    %v318 = vunpack.c.h.b16 %v204
    %v319 = vunpack.c.l.b16 %v205
    %v320 = vunpack.c.h.b16 %v205
    %v321 = vunpack.c.l.b16 %v206
    %v322 = vunpack.c.h.b16 %v206
    %v323 = vunpack.c.l.b16 %v207
    %v324 = vunpack.c.h.b16 %v207
    %v325 = vunpack.c.l.b16 %v208
    %v326 = vunpack.c.h.b16 %v208
    %v327 = vunpack.c.l.b16 %v209
    %v328 = vunpack.c.h.b16 %v209
    %v329 = vunpack.c.l.b16 %v210
    %v330 = vunpack.c.h.b16 %v210
    %v331 = vunpack.c.l.b16 %v211
    %v332 = vunpack.c.h.b16 %v211
    %v333 = vunpack.c.l.b16 %v212
    %v334 = vunpack.c.h.b16 %v212
    %v335 = vunpack.c.l.b16 %v213
    %v336 = vunpack.c.h.b16 %v213
    %v337 = vunpack.c.l.b16 %v214
    %v338 = vunpack.c.h.b16 %v214
    %v339 = vunpack.c.l.b16 %v215
    %v340 = vunpack.c.h.b16 %v215
    %v341 = vunpack.c.l.b16 %v216
    %v342 = vunpack.c.h.b16 %v216
    %v343 = vunpack.c.l.b16 %v217
    %v344 = vunpack.c.h.b16 %v217
    %v345 = vunpack.c.l.b16 %v218
    %v346 = vunpack.c.h.b16 %v218
    %v347 = vunpack.c.l.b16 %v219
    %v348 = vunpack.c.h.b16 %v219
    %v349 = vunpack.c.l.b16 %v220
    %v350 = vunpack.c.h.b16 %v220
    %v351 = vunpack.c.l.b16 %v221
    %v352 = vunpack.c.h.b16 %v221
    %v353 = vunpack.c.l.b16 %v222
    %v354 = vunpack.c.h.b16 %v222
    %v355 = vunpack.c.l.b16 %v223
    %v356 = vunpack.c.h.b16 %v223
    %v357 = vunpack.c.l.b16 %v224
    %v358 = vunpack.c.h.b16 %v224
    %v359 = vunpack.c.l.b16 %v225
    %v360 = vunpack.c.h.b16 %v225
    %v361 = vunpack.c.l.b16 %v226
    %v362 = vunpack.c.h.b16 %v226
    %v363 = vunpack.c.l.b16 %v227
    %v364 = vunpack.c.h.b16 %v227
    %v365 = vunpack.c.l.b16 %v228
    %v366 = vunpack.c.h.b16 %v228
    %v367 = vunpack.c.l.b16 %v229
    %v368 = vunpack.c.h.b16 %v229
    %v369 = vunpack.c.l.b16 %v230
    %v370 = vunpack.c.h.b16 %v230
    %v371 = vunpack.c.l.b16 %v231
    %v372 = vunpack.c.h.b16 %v231
    %v373 = vunpack.c.l.b16 %v232
    %v374 = vunpack.c.h.b16 %v232
    %v375 = vunpack.c.l.b16 %v233
    %v376 = vunpack.c.h.b16 %v233
    %v377 = vunpack.c.l.b16 %v234
    %v378 = vunpack.c.h.b16 %v234
    %v379 = vpack.c.b16 %v319, %v315
    %v380 = vpack.c.b16 %v320, %v316
    %v381 = vpack.c.b16 %v321, %v317
    %v382 = vpack.c.b16 %v322, %v318
    %v383 = vpack.c.b16 %v327, %v323
    %v384 = vpack.c.b16 %v328, %v324
    %v385 = vpack.c.b16 %v329, %v325
    %v386 = vpack.c.b16 %v330, %v326
    %v387 = vpack.c.b16 %v335, %v331
    %v388 = vpack.c.b16 %v336, %v332
    %v389 = vpack.c.b16 %v337, %v333
    %v390 = vpack.c.b16 %v338, %v334
    %v391 = vpack.c.b16 %v343, %v339
    %v392 = vpack.c.b16 %v344, %v340
    %v393 = vpack.c.b16 %v345, %v341
    %v394 = vpack.c.b16 %v346, %v342
    %v395 = vpack.c.b16 %v351, %v347
    %v396 = vpack.c.b16 %v352, %v348
    %v397 = vpack.c.b16 %v353, %v349
    %v398 = vpack.c.b16 %v354, %v350
    %v399 = vpack.c.b16 %v359, %v355
    %v400 = vpack.c.b16 %v360, %v356
    %v401 = vpack.c.b16 %v361, %v357
    %v402 = vpack.c.b16 %v362, %v358
    %v403 = vpack.c.b16 %v367, %v363
    %v404 = vpack.c.b16 %v368, %v364
    %v405 = vpack.c.b16 %v369, %v365
    %v406 = vpack.c.b16 %v370, %v366
    %v407 = vpack.c.b16 %v375, %v371
    %v408 = vpack.c.b16 %v376, %v372
    %v409 = vpack.c.b16 %v377, %v373
    %v410 = vpack.c.b16 %v378, %v374
    %443 = vmatprep.subr.bf16.mxu0 %v380
    %444 = vmatpush1.bf16.msra.mxu0 %v379
    %445 = vmatprep.subr.bf16.mxu0 %v384
    %446 = vmatpush1.bf16.msra.mxu0 %v383
    %447 = vmatprep.subr.bf16.mxu0 %v388
    %448 = vmatpush1.bf16.msra.mxu0 %v387
    %449 = vmatprep.subr.bf16.mxu0 %v392
    %450 = vmatpush1.bf16.msra.mxu0 %v391
    %451 = vmatprep.subr.bf16.mxu0 %v396
    %452 = vmatpush1.bf16.msra.mxu0 %v395
    %453 = vmatprep.subr.bf16.mxu0 %v400
    %454 = vmatpush1.bf16.msra.mxu0 %v399
    %455 = vmatprep.subr.bf16.mxu0 %v404
    %456 = vmatpush1.bf16.msra.mxu0 %v403
    %457 = vmatprep.subr.bf16.mxu0 %v408
    %458 = vmatpush1.bf16.msra.mxu0 %v407
    %459 = vmatprep.subr.bf16.mxu0 0
    %460 = vmatpush1.bf16.msra.mxu0 0
    %461 = vmatprep.subr.bf16.mxu0 0
    %462 = vmatpush1.bf16.msra.mxu0 0
    %463 = vmatprep.subr.bf16.mxu0 0
    %464 = vmatpush1.bf16.msra.mxu0 0
    %465 = vmatprep.subr.bf16.mxu0 0
    %466 = vmatpush1.bf16.msra.mxu0 0
    %467 = vmatprep.subr.bf16.mxu0 0
    %468 = vmatpush1.bf16.msra.mxu0 0
    %469 = vmatprep.subr.bf16.mxu0 0
    %470 = vmatpush1.bf16.msra.mxu0 0
    %471 = vmatprep.subr.bf16.mxu0 0
    %472 = vmatpush1.bf16.msra.mxu0 0
    %473 = vmatprep.subr.bf16.mxu0 0
    %474 = vmatpush1.bf16.msra.mxu0 0
    %475 = vmatprep.mubr.bf16.mxu0 0
    %476 = vmatmul.mubr.bf16.gmra.mrb[0].mxu0 %v267
    %v477 = vpop.f32.mrb[0].mxu0
    %v478 = vadd.f32 0.0, %v477
    %v479 = vpop.f32.mrb[0].mxu0
    %v480 = vadd.f32 0.0, %v479
    %v481 = vpop.f32.mrb[0].mxu0
    %v482 = vadd.f32 0.0, %v481
    %v483 = vpop.f32.mrb[0].mxu0
    %v484 = vadd.f32 0.0, %v483
    %485 = vmatprep.mubr.bf16.mxu0 0
    %486 = vmatmul.mubr.bf16.gmra.mrb[0].mxu0 %v268
    %v487 = vpop.f32.mrb[0].mxu0
    %v488 = vadd.f32 0.0, %v487
    %v489 = vpop.f32.mrb[0].mxu0
    %v490 = vadd.f32 0.0, %v489
    %v491 = vpop.f32.mrb[0].mxu0
    %v492 = vadd.f32 0.0, %v491
    %v493 = vpop.f32.mrb[0].mxu0
    %v494 = vadd.f32 0.0, %v493
    %495 = vmatprep.mubr.bf16.mxu0 0
    %496 = vmatmul.mubr.bf16.gmra.mrb[0].mxu0 %v269
    %v497 = vpop.f32.mrb[0].mxu0
    %v498 = vadd.f32 0.0, %v497
    %v499 = vpop.f32.mrb[0].mxu0
    %v500 = vadd.f32 0.0, %v499
    %v501 = vpop.f32.mrb[0].mxu0
    %v502 = vadd.f32 0.0, %v501
    %v503 = vpop.f32.mrb[0].mxu0
    %v504 = vadd.f32 0.0, %v503
    %505 = vmatprep.mubr.bf16.mxu0 0
    %506 = vmatmul.mubr.bf16.gmra.mrb[0].mxu0 %v270
    %v507 = vpop.f32.mrb[0].mxu0
    %v508 = vadd.f32 0.0, %v507
    %v509 = vpop.f32.mrb[0].mxu0
    %v510 = vadd.f32 0.0, %v509
    %v511 = vpop.f32.mrb[0].mxu0
    %v512 = vadd.f32 0.0, %v511
    %v513 = vpop.f32.mrb[0].mxu0
    %v514 = vadd.f32 0.0, %v513
    %515 = vmatprep.mubr.bf16.mxu0 0
    %516 = vmatmul.mubr.bf16.gmra.mrb[0].mxu0 %v271
    %v517 = vpop.f32.mrb[0].mxu0
    %v518 = vadd.f32 0.0, %v517
    %v519 = vpop.f32.mrb[0].mxu0
    %v520 = vadd.f32 0.0, %v519
    %v521 = vpop.f32.mrb[0].mxu0
    %v522 = vadd.f32 0.0, %v521
    %v523 = vpop.f32.mrb[0].mxu0
    %v524 = vadd.f32 0.0, %v523
    %525 = vmatprep.mubr.bf16.mxu0 0
    %526 = vmatmul.mubr.bf16.gmra.mrb[0].mxu0 %v272
    %v527 = vpop.f32.mrb[0].mxu0
    %v528 = vadd.f32 0.0, %v527
    %v529 = vpop.f32.mrb[0].mxu0
    %v530 = vadd.f32 0.0, %v529
    %v531 = vpop.f32.mrb[0].mxu0
    %v532 = vadd.f32 0.0, %v531
    %v533 = vpop.f32.mrb[0].mxu0
    %v534 = vadd.f32 0.0, %v533
    %535 = vmatprep.mubr.bf16.mxu0 0
    %536 = vmatmul.mubr.bf16.gmra.mrb[0].mxu0 %v273
    %v537 = vpop.f32.mrb[0].mxu0
    %v538 = vadd.f32 0.0, %v537
    %v539 = vpop.f32.mrb[0].mxu0
    %v540 = vadd.f32 0.0, %v539
    %v541 = vpop.f32.mrb[0].mxu0
    %v542 = vadd.f32 0.0, %v541
    %v543 = vpop.f32.mrb[0].mxu0
    %v544 = vadd.f32 0.0, %v543
    %545 = vmatprep.mubr.bf16.mxu0 0
    %546 = vmatmul.mubr.bf16.gmra.mrb[0].mxu0 %v274
    %v547 = vpop.f32.mrb[0].mxu0
    %v548 = vadd.f32 0.0, %v547
    %v549 = vpop.f32.mrb[0].mxu0
    %v550 = vadd.f32 0.0, %v549
    %v551 = vpop.f32.mrb[0].mxu0
    %v552 = vadd.f32 0.0, %v551
    %v553 = vpop.f32.mrb[0].mxu0
    %v554 = vadd.f32 0.0, %v553
    %555 = vdwg.mxu0
    %556 = vmatprep.subr.bf16.mxu0 %v382
    %557 = vmatpush1.bf16.msra.mxu0 %v381
    %558 = vmatprep.subr.bf16.mxu0 %v386
    %559 = vmatpush1.bf16.msra.mxu0 %v385
    %560 = vmatprep.subr.bf16.mxu0 %v390
    %561 = vmatpush1.bf16.msra.mxu0 %v389
    %562 = vmatprep.subr.bf16.mxu0 %v394
    %563 = vmatpush1.bf16.msra.mxu0 %v393
    %564 = vmatprep.subr.bf16.mxu0 %v398
    %565 = vmatpush1.bf16.msra.mxu0 %v397
    %566 = vmatprep.subr.bf16.mxu0 %v402
    %567 = vmatpush1.bf16.msra.mxu0 %v401
    %568 = vmatprep.subr.bf16.mxu0 %v406
    %569 = vmatpush1.bf16.msra.mxu0 %v405
    %570 = vmatprep.subr.bf16.mxu0 %v410
    %571 = vmatpush1.bf16.msra.mxu0 %v409
    %572 = vmatprep.subr.bf16.mxu0 0
    %573 = vmatpush1.bf16.msra.mxu0 0
    %574 = vmatprep.subr.bf16.mxu0 0
    %575 = vmatpush1.bf16.msra.mxu0 0
    %576 = vmatprep.subr.bf16.mxu0 0
    %577 = vmatpush1.bf16.msra.mxu0 0
    %578 = vmatprep.subr.bf16.mxu0 0
    %579 = vmatpush1.bf16.msra.mxu0 0
    %580 = vmatprep.subr.bf16.mxu0 0
    %581 = vmatpush1.bf16.msra.mxu0 0
    %582 = vmatprep.subr.bf16.mxu0 0
    %583 = vmatpush1.bf16.msra.mxu0 0
    %584 = vmatprep.subr.bf16.mxu0 0
    %585 = vmatpush1.bf16.msra.mxu0 0
    %586 = vmatprep.subr.bf16.mxu0 0
    %587 = vmatpush1.bf16.msra.mxu0 0
    %588 = vmatprep.mubr.bf16.mxu0 0
    %589 = vmatmul.mubr.bf16.gmra.mrb[0].mxu0 %v267
    %v590 = vpop.f32.mrb[0].mxu0
    %v591 = vadd.f32 0.0, %v590
    %v592 = vpop.f32.mrb[0].mxu0
    %v593 = vadd.f32 0.0, %v592
    %v594 = vpop.f32.mrb[0].mxu0
    %v595 = vadd.f32 0.0, %v594
    %v596 = vpop.f32.mrb[0].mxu0
    %v597 = vadd.f32 0.0, %v596
    %598 = vmatprep.mubr.bf16.mxu0 0
    %599 = vmatmul.mubr.bf16.gmra.mrb[0].mxu0 %v268
    %v600 = vpop.f32.mrb[0].mxu0
    %v601 = vadd.f32 0.0, %v600
    %v602 = vpop.f32.mrb[0].mxu0
    %v603 = vadd.f32 0.0, %v602
    %v604 = vpop.f32.mrb[0].mxu0
    %v605 = vadd.f32 0.0, %v604
    %v606 = vpop.f32.mrb[0].mxu0
    %v607 = vadd.f32 0.0, %v606
    %608 = vmatprep.mubr.bf16.mxu0 0
    %609 = vmatmul.mubr.bf16.gmra.mrb[0].mxu0 %v269
    %v610 = vpop.f32.mrb[0].mxu0
    %v611 = vadd.f32 0.0, %v610
    %v612 = vpop.f32.mrb[0].mxu0
    %v613 = vadd.f32 0.0, %v612
    %v614 = vpop.f32.mrb[0].mxu0
    %v615 = vadd.f32 0.0, %v614
    %v616 = vpop.f32.mrb[0].mxu0
    %v617 = vadd.f32 0.0, %v616
    %618 = vmatprep.mubr.bf16.mxu0 0
    %619 = vmatmul.mubr.bf16.gmra.mrb[0].mxu0 %v270
    %v620 = vpop.f32.mrb[0].mxu0
    %v621 = vadd.f32 0.0, %v620
    %v622 = vpop.f32.mrb[0].mxu0
    %v623 = vadd.f32 0.0, %v622
    %v624 = vpop.f32.mrb[0].mxu0
    %v625 = vadd.f32 0.0, %v624
    %v626 = vpop.f32.mrb[0].mxu0
    %v627 = vadd.f32 0.0, %v626
    %628 = vmatprep.mubr.bf16.mxu0 0
    %629 = vmatmul.mubr.bf16.gmra.mrb[0].mxu0 %v271
    %v630 = vpop.f32.mrb[0].mxu0
    %v631 = vadd.f32 0.0, %v630
    %v632 = vpop.f32.mrb[0].mxu0
    %v633 = vadd.f32 0.0, %v632
    %v634 = vpop.f32.mrb[0].mxu0
    %v635 = vadd.f32 0.0, %v634
    %v636 = vpop.f32.mrb[0].mxu0
    %v637 = vadd.f32 0.0, %v636
    %638 = vmatprep.mubr.bf16.mxu0 0
    %639 = vmatmul.mubr.bf16.gmra.mrb[0].mxu0 %v272
    %v640 = vpop.f32.mrb[0].mxu0
    %v641 = vadd.f32 0.0, %v640
    %v642 = vpop.f32.mrb[0].mxu0
    %v643 = vadd.f32 0.0, %v642
    %v644 = vpop.f32.mrb[0].mxu0
    %v645 = vadd.f32 0.0, %v644
    %v646 = vpop.f32.mrb[0].mxu0
    %v647 = vadd.f32 0.0, %v646
    %648 = vmatprep.mubr.bf16.mxu0 0
    %649 = vmatmul.mubr.bf16.gmra.mrb[0].mxu0 %v273
    %v650 = vpop.f32.mrb[0].mxu0
    %v651 = vadd.f32 0.0, %v650
    %v652 = vpop.f32.mrb[0].mxu0
    %v653 = vadd.f32 0.0, %v652
    %v654 = vpop.f32.mrb[0].mxu0
    %v655 = vadd.f32 0.0, %v654
    %v656 = vpop.f32.mrb[0].mxu0
    %v657 = vadd.f32 0.0, %v656
    %658 = vmatprep.mubr.bf16.mxu0 0
    %659 = vmatmul.mubr.bf16.gmra.mrb[0].mxu0 %v274
    %v660 = vpop.f32.mrb[0].mxu0
    %v661 = vadd.f32 0.0, %v660
    %v662 = vpop.f32.mrb[0].mxu0
    %v663 = vadd.f32 0.0, %v662
    %v664 = vpop.f32.mrb[0].mxu0
    %v665 = vadd.f32 0.0, %v664
    %v666 = vpop.f32.mrb[0].mxu0
    %v667 = vadd.f32 0.0, %v666
    %668 = vdwg.mxu0
    %v669 = vadd.f32 %v123, %v478
    %v670 = vadd.f32 %v124, %v480
    %v671 = vadd.f32 %v125, %v591
    %v672 = vadd.f32 %v126, %v593
    %v673 = vadd.f32 %v127, %v482
    %v674 = vadd.f32 %v128, %v484
    %v675 = vadd.f32 %v129, %v595
    %v676 = vadd.f32 %v130, %v597
    %v677 = vadd.f32 %v131, %v488
    %v678 = vadd.f32 %v132, %v490
    %v679 = vadd.f32 %v133, %v601
    %v680 = vadd.f32 %v134, %v603
    %v681 = vadd.f32 %v135, %v492
    %v682 = vadd.f32 %v136, %v494
    %v683 = vadd.f32 %v137, %v605
    %v684 = vadd.f32 %v138, %v607
    %v685 = vadd.f32 %v139, %v498
    %v686 = vadd.f32 %v140, %v500
    %v687 = vadd.f32 %v141, %v611
    %v688 = vadd.f32 %v142, %v613
    %v689 = vadd.f32 %v143, %v502
    %v690 = vadd.f32 %v144, %v504
    %v691 = vadd.f32 %v145, %v615
    %v692 = vadd.f32 %v146, %v617
    %v693 = vadd.f32 %v147, %v508
    %v694 = vadd.f32 %v148, %v510
    %v695 = vadd.f32 %v149, %v621
    %v696 = vadd.f32 %v150, %v623
    %v697 = vadd.f32 %v151, %v512
    %v698 = vadd.f32 %v152, %v514
    %v699 = vadd.f32 %v153, %v625
    %v700 = vadd.f32 %v154, %v627
    %v701 = vadd.f32 %v155, %v518
    %v702 = vadd.f32 %v156, %v520
    %v703 = vadd.f32 %v157, %v631
    %v704 = vadd.f32 %v158, %v633
    %v705 = vadd.f32 %v159, %v522
    %v706 = vadd.f32 %v160, %v524
    %v707 = vadd.f32 %v161, %v635
    %v708 = vadd.f32 %v162, %v637
    %v709 = vadd.f32 %v163, %v528
    %v710 = vadd.f32 %v164, %v530
    %v711 = vadd.f32 %v165, %v641
    %v712 = vadd.f32 %v166, %v643
    %v713 = vadd.f32 %v167, %v532
    %v714 = vadd.f32 %v168, %v534
    %v715 = vadd.f32 %v169, %v645
    %v716 = vadd.f32 %v170, %v647
    %v717 = vadd.f32 %v171, %v538
    %v718 = vadd.f32 %v172, %v540
    %v719 = vadd.f32 %v173, %v651
    %v720 = vadd.f32 %v174, %v653
    %v721 = vadd.f32 %v175, %v542
    %v722 = vadd.f32 %v176, %v544
    %v723 = vadd.f32 %v177, %v655
    %v724 = vadd.f32 %v178, %v657
    %v725 = vadd.f32 %v179, %v548
    %v726 = vadd.f32 %v180, %v550
    %v727 = vadd.f32 %v181, %v661
    %v728 = vadd.f32 %v182, %v663
    %v729 = vadd.f32 %v183, %v552
    %v730 = vadd.f32 %v184, %v554
    %v731 = vadd.f32 %v185, %v665
    %v732 = vadd.f32 %v186, %v667
    %733 = vst [vmem:[#allocation2] sm:$0xff] %v669
    %734 = vst [vmem:[#allocation2 + $0x8] sm:$0xff] %v670
    %735 = vst [vmem:[#allocation2 + $0x10] sm:$0xff] %v671
    %736 = vst [vmem:[#allocation2 + $0x18] sm:$0xff] %v672
    %737 = vst [vmem:[#allocation2 + $0x20] sm:$0xff] %v673
    %738 = vst [vmem:[#allocation2 + $0x28] sm:$0xff] %v674
    %739 = vst [vmem:[#allocation2 + $0x30] sm:$0xff] %v675
    %740 = vst [vmem:[#allocation2 + $0x38] sm:$0xff] %v676
    %741 = vst [vmem:[#allocation2 + $0x40] sm:$0xff] %v677
    %742 = vst [vmem:[#allocation2 + $0x48] sm:$0xff] %v678
    %743 = vst [vmem:[#allocation2 + $0x50] sm:$0xff] %v679
    %744 = vst [vmem:[#allocation2 + $0x58] sm:$0xff] %v680
    %745 = vst [vmem:[#allocation2 + $0x60] sm:$0xff] %v681
    %746 = vst [vmem:[#allocation2 + $0x68] sm:$0xff] %v682
    %747 = vst [vmem:[#allocation2 + $0x70] sm:$0xff] %v683
    %748 = vst [vmem:[#allocation2 + $0x78] sm:$0xff] %v684
    %749 = vst [vmem:[#allocation2 + $0x80] sm:$0xff] %v685
    %750 = vst [vmem:[#allocation2 + $0x88] sm:$0xff] %v686
    %751 = vst [vmem:[#allocation2 + $0x90] sm:$0xff] %v687
    %752 = vst [vmem:[#allocation2 + $0x98] sm:$0xff] %v688
    %753 = vst [vmem:[#allocation2 + $0xa0] sm:$0xff] %v689
    %754 = vst [vmem:[#allocation2 + $0xa8] sm:$0xff] %v690
    %755 = vst [vmem:[#allocation2 + $0xb0] sm:$0xff] %v691
    %756 = vst [vmem:[#allocation2 + $0xb8] sm:$0xff] %v692
    %757 = vst [vmem:[#allocation2 + $0xc0] sm:$0xff] %v693
    %758 = vst [vmem:[#allocation2 + $0xc8] sm:$0xff] %v694
    %759 = vst [vmem:[#allocation2 + $0xd0] sm:$0xff] %v695
    %760 = vst [vmem:[#allocation2 + $0xd8] sm:$0xff] %v696
    %761 = vst [vmem:[#allocation2 + $0xe0] sm:$0xff] %v697
    %762 = vst [vmem:[#allocation2 + $0xe8] sm:$0xff] %v698
    %763 = vst [vmem:[#allocation2 + $0xf0] sm:$0xff] %v699
    %764 = vst [vmem:[#allocation2 + $0xf8] sm:$0xff] %v700
    %765 = vst [vmem:[#allocation2 + $0x100] sm:$0xff] %v701
    %766 = vst [vmem:[#allocation2 + $0x108] sm:$0xff] %v702
    %767 = vst [vmem:[#allocation2 + $0x110] sm:$0xff] %v703
    %768 = vst [vmem:[#allocation2 + $0x118] sm:$0xff] %v704
    %769 = vst [vmem:[#allocation2 + $0x120] sm:$0xff] %v705
    %770 = vst [vmem:[#allocation2 + $0x128] sm:$0xff] %v706
    %771 = vst [vmem:[#allocation2 + $0x130] sm:$0xff] %v707
    %772 = vst [vmem:[#allocation2 + $0x138] sm:$0xff] %v708
    %773 = vst [vmem:[#allocation2 + $0x140] sm:$0xff] %v709
    %774 = vst [vmem:[#allocation2 + $0x148] sm:$0xff] %v710
    %775 = vst [vmem:[#allocation2 + $0x150] sm:$0xff] %v711
    %776 = vst [vmem:[#allocation2 + $0x158] sm:$0xff] %v712
    %777 = vst [vmem:[#allocation2 + $0x160] sm:$0xff] %v713
    %778 = vst [vmem:[#allocation2 + $0x168] sm:$0xff] %v714
    %779 = vst [vmem:[#allocation2 + $0x170] sm:$0xff] %v715
    %780 = vst [vmem:[#allocation2 + $0x178] sm:$0xff] %v716
    %781 = vst [vmem:[#allocation2 + $0x180] sm:$0xff] %v717
    %782 = vst [vmem:[#allocation2 + $0x188] sm:$0xff] %v718
    %783 = vst [vmem:[#allocation2 + $0x190] sm:$0xff] %v719
    %784 = vst [vmem:[#allocation2 + $0x198] sm:$0xff] %v720
    %785 = vst [vmem:[#allocation2 + $0x1a0] sm:$0xff] %v721
    %786 = vst [vmem:[#allocation2 + $0x1a8] sm:$0xff] %v722
    %787 = vst [vmem:[#allocation2 + $0x1b0] sm:$0xff] %v723
    %788 = vst [vmem:[#allocation2 + $0x1b8] sm:$0xff] %v724
    %789 = vst [vmem:[#allocation2 + $0x1c0] sm:$0xff] %v725
    %790 = vst [vmem:[#allocation2 + $0x1c8] sm:$0xff] %v726
    %791 = vst [vmem:[#allocation2 + $0x1d0] sm:$0xff] %v727
    %792 = vst [vmem:[#allocation2 + $0x1d8] sm:$0xff] %v728
    %793 = vst [vmem:[#allocation2 + $0x1e0] sm:$0xff] %v729
    %794 = vst [vmem:[#allocation2 + $0x1e8] sm:$0xff] %v730
    %795 = vst [vmem:[#allocation2 + $0x1f0] sm:$0xff] %v731
    %796 = vst [vmem:[#allocation2 + $0x1f8] sm:$0xff] %v732
    // Predicated region
    $region30: #{decoder_rnn_forward.3} parent=1 // pred_check
      %p797 = pneg %p55
    $region31: #{decoder_rnn_forward.3} parent=1 // pred_check_branch
      %799 = sbr.rel (%p797) target = $region33
    $region32: #{decoder_rnn_forward.3} parent=1 // pred_region
      %v800 = vld [vmem:[#allocation2] sm:$0xff]
      %v801 = vld [vmem:[#allocation2 + $0x8] sm:$0xff]
      %v802 = vld [vmem:[#allocation2 + $0x10] sm:$0xff]
      %v803 = vld [vmem:[#allocation2 + $0x18] sm:$0xff]
      %v804 = vld [vmem:[#allocation2 + $0x20] sm:$0xff]
      %v805 = vld [vmem:[#allocation2 + $0x28] sm:$0xff]
      %v806 = vld [vmem:[#allocation2 + $0x30] sm:$0xff]
      %v807 = vld [vmem:[#allocation2 + $0x38] sm:$0xff]
      %v808 = vld [vmem:[#allocation2 + $0x40] sm:$0xff]
      %v809 = vld [vmem:[#allocation2 + $0x48] sm:$0xff]
      %v810 = vld [vmem:[#allocation2 + $0x50] sm:$0xff]
      %v811 = vld [vmem:[#allocation2 + $0x58] sm:$0xff]
      %v812 = vld [vmem:[#allocation2 + $0x60] sm:$0xff]
      %v813 = vld [vmem:[#allocation2 + $0x68] sm:$0xff]
      %v814 = vld [vmem:[#allocation2 + $0x70] sm:$0xff]
      %v815 = vld [vmem:[#allocation2 + $0x78] sm:$0xff]
      %v816 = vld [vmem:[#allocation2 + $0x80] sm:$0xff]
      %v817 = vld [vmem:[#allocation2 + $0x88] sm:$0xff]
      %v818 = vld [vmem:[#allocation2 + $0x90] sm:$0xff]
      %v819 = vld [vmem:[#allocation2 + $0x98] sm:$0xff]
      %v820 = vld [vmem:[#allocation2 + $0xa0] sm:$0xff]
      %v821 = vld [vmem:[#allocation2 + $0xa8] sm:$0xff]
      %v822 = vld [vmem:[#allocation2 + $0xb0] sm:$0xff]
      %v823 = vld [vmem:[#allocation2 + $0xb8] sm:$0xff]
      %v824 = vld [vmem:[#allocation2 + $0xc0] sm:$0xff]
      %v825 = vld [vmem:[#allocation2 + $0xc8] sm:$0xff]
      %v826 = vld [vmem:[#allocation2 + $0xd0] sm:$0xff]
      %v827 = vld [vmem:[#allocation2 + $0xd8] sm:$0xff]
      %v828 = vld [vmem:[#allocation2 + $0xe0] sm:$0xff]
      %v829 = vld [vmem:[#allocation2 + $0xe8] sm:$0xff]
      %v830 = vld [vmem:[#allocation2 + $0xf0] sm:$0xff]
      %v831 = vld [vmem:[#allocation2 + $0xf8] sm:$0xff]
      %v832 = vld [vmem:[#allocation2 + $0x100] sm:$0xff]
      %v833 = vld [vmem:[#allocation2 + $0x108] sm:$0xff]
      %v834 = vld [vmem:[#allocation2 + $0x110] sm:$0xff]
      %v835 = vld [vmem:[#allocation2 + $0x118] sm:$0xff]
      %v836 = vld [vmem:[#allocation2 + $0x120] sm:$0xff]
      %v837 = vld [vmem:[#allocation2 + $0x128] sm:$0xff]
      %v838 = vld [vmem:[#allocation2 + $0x130] sm:$0xff]
      %v839 = vld [vmem:[#allocation2 + $0x138] sm:$0xff]
      %v840 = vld [vmem:[#allocation2 + $0x140] sm:$0xff]
      %v841 = vld [vmem:[#allocation2 + $0x148] sm:$0xff]
      %v842 = vld [vmem:[#allocation2 + $0x150] sm:$0xff]
      %v843 = vld [vmem:[#allocation2 + $0x158] sm:$0xff]
      %v844 = vld [vmem:[#allocation2 + $0x160] sm:$0xff]
      %v845 = vld [vmem:[#allocation2 + $0x168] sm:$0xff]
      %v846 = vld [vmem:[#allocation2 + $0x170] sm:$0xff]
      %v847 = vld [vmem:[#allocation2 + $0x178] sm:$0xff]
      %v848 = vld [vmem:[#allocation2 + $0x180] sm:$0xff]
      %v849 = vld [vmem:[#allocation2 + $0x188] sm:$0xff]
      %v850 = vld [vmem:[#allocation2 + $0x190] sm:$0xff]
      %v851 = vld [vmem:[#allocation2 + $0x198] sm:$0xff]
      %v852 = vld [vmem:[#allocation2 + $0x1a0] sm:$0xff]
      %v853 = vld [vmem:[#allocation2 + $0x1a8] sm:$0xff]
      %v854 = vld [vmem:[#allocation2 + $0x1b0] sm:$0xff]
      %v855 = vld [vmem:[#allocation2 + $0x1b8] sm:$0xff]
      %v856 = vld [vmem:[#allocation2 + $0x1c0] sm:$0xff]
      %v857 = vld [vmem:[#allocation2 + $0x1c8] sm:$0xff]
      %v858 = vld [vmem:[#allocation2 + $0x1d0] sm:$0xff]
      %v859 = vld [vmem:[#allocation2 + $0x1d8] sm:$0xff]
      %v860 = vld [vmem:[#allocation2 + $0x1e0] sm:$0xff]
      %v861 = vld [vmem:[#allocation2 + $0x1e8] sm:$0xff]
      %v862 = vld [vmem:[#allocation2 + $0x1f0] sm:$0xff]
      %v863 = vld [vmem:[#allocation2 + $0x1f8] sm:$0xff]
      %v864 = vld [vmem:[#allocation8] sm:$0xf]
      %v866 = vlaneseq
      %v867 = vshrl.u32 %v866, 7
      %v868 = vsub.s32 0, %v867
      %v869 = vrot.slane %v864, %v868
      %v870 = vlaneseq
      %v871 = vshrl.u32 %v870, 7
      %v872 = vsub.s32 1, %v871
      %v873 = vrot.slane %v864, %v872
      %v874 = vlaneseq
      %v875 = vshrl.u32 %v874, 7
      %v876 = vsub.s32 2, %v875
      %v877 = vrot.slane %v864, %v876
      %v878 = vlaneseq
      %v879 = vshrl.u32 %v878, 7
      %v880 = vsub.s32 3, %v879
      %v881 = vrot.slane %v864, %v880
      %v886 = vadd.f32 %v800, %v869
      %v887 = vadd.f32 %v801, %v873
      %v888 = vadd.f32 %v802, %v877
      %v889 = vadd.f32 %v803, %v881
      %v890 = vadd.f32 %v804, %v869
      %v891 = vadd.f32 %v805, %v873
      %v892 = vadd.f32 %v806, %v877
      %v893 = vadd.f32 %v807, %v881
      %v894 = vadd.f32 %v808, %v869
      %v895 = vadd.f32 %v809, %v873
      %v896 = vadd.f32 %v810, %v877
      %v897 = vadd.f32 %v811, %v881
      %v898 = vadd.f32 %v812, %v869
      %v899 = vadd.f32 %v813, %v873
      %v900 = vadd.f32 %v814, %v877
      %v901 = vadd.f32 %v815, %v881
      %v902 = vadd.f32 %v816, %v869
      %v903 = vadd.f32 %v817, %v873
      %v904 = vadd.f32 %v818, %v877
      %v905 = vadd.f32 %v819, %v881
      %v906 = vadd.f32 %v820, %v869
      %v907 = vadd.f32 %v821, %v873
      %v908 = vadd.f32 %v822, %v877
      %v909 = vadd.f32 %v823, %v881
      %v910 = vadd.f32 %v824, %v869
      %v911 = vadd.f32 %v825, %v873
      %v912 = vadd.f32 %v826, %v877
      %v913 = vadd.f32 %v827, %v881
      %v914 = vadd.f32 %v828, %v869
      %v915 = vadd.f32 %v829, %v873
      %v916 = vadd.f32 %v830, %v877
      %v917 = vadd.f32 %v831, %v881
      %v918 = vadd.f32 %v832, %v869
      %v919 = vadd.f32 %v833, %v873
      %v920 = vadd.f32 %v834, %v877
      %v921 = vadd.f32 %v835, %v881
      %v922 = vadd.f32 %v836, %v869
      %v923 = vadd.f32 %v837, %v873
      %v924 = vadd.f32 %v838, %v877
      %v925 = vadd.f32 %v839, %v881
      %v926 = vadd.f32 %v840, %v869
      %v927 = vadd.f32 %v841, %v873
      %v928 = vadd.f32 %v842, %v877
      %v929 = vadd.f32 %v843, %v881
      %v930 = vadd.f32 %v844, %v869
      %v931 = vadd.f32 %v845, %v873
      %v932 = vadd.f32 %v846, %v877
      %v933 = vadd.f32 %v847, %v881
      %v934 = vadd.f32 %v848, %v869
      %v935 = vadd.f32 %v849, %v873
      %v936 = vadd.f32 %v850, %v877
      %v937 = vadd.f32 %v851, %v881
      %v938 = vadd.f32 %v852, %v869
      %v939 = vadd.f32 %v853, %v873
      %v940 = vadd.f32 %v854, %v877
      %v941 = vadd.f32 %v855, %v881
      %v942 = vadd.f32 %v856, %v869
      %v943 = vadd.f32 %v857, %v873
      %v944 = vadd.f32 %v858, %v877
      %v945 = vadd.f32 %v859, %v881
      %v946 = vadd.f32 %v860, %v869
      %v947 = vadd.f32 %v861, %v873
      %v948 = vadd.f32 %v862, %v877
      %v949 = vadd.f32 %v863, %v881
      %950 = vst [vmem:[#allocation9] sm:$0xff] %v886
      %951 = vst [vmem:[#allocation9 + $0x8] sm:$0xff] %v887
      %952 = vst [vmem:[#allocation9 + $0x10] sm:$0xff] %v888
      %953 = vst [vmem:[#allocation9 + $0x18] sm:$0xff] %v889
      %954 = vst [vmem:[#allocation9 + $0x20] sm:$0xff] %v890
      %955 = vst [vmem:[#allocation9 + $0x28] sm:$0xff] %v891
      %956 = vst [vmem:[#allocation9 + $0x30] sm:$0xff] %v892
      %957 = vst [vmem:[#allocation9 + $0x38] sm:$0xff] %v893
      %958 = vst [vmem:[#allocation9 + $0x40] sm:$0xff] %v894
      %959 = vst [vmem:[#allocation9 + $0x48] sm:$0xff] %v895
      %960 = vst [vmem:[#allocation9 + $0x50] sm:$0xff] %v896
      %961 = vst [vmem:[#allocation9 + $0x58] sm:$0xff] %v897
      %962 = vst [vmem:[#allocation9 + $0x60] sm:$0xff] %v898
      %963 = vst [vmem:[#allocation9 + $0x68] sm:$0xff] %v899
      %964 = vst [vmem:[#allocation9 + $0x70] sm:$0xff] %v900
      %965 = vst [vmem:[#allocation9 + $0x78] sm:$0xff] %v901
      %966 = vst [vmem:[#allocation9 + $0x80] sm:$0xff] %v902
      %967 = vst [vmem:[#allocation9 + $0x88] sm:$0xff] %v903
      %968 = vst [vmem:[#allocation9 + $0x90] sm:$0xff] %v904
      %969 = vst [vmem:[#allocation9 + $0x98] sm:$0xff] %v905
      %970 = vst [vmem:[#allocation9 + $0xa0] sm:$0xff] %v906
      %971 = vst [vmem:[#allocation9 + $0xa8] sm:$0xff] %v907
      %972 = vst [vmem:[#allocation9 + $0xb0] sm:$0xff] %v908
      %973 = vst [vmem:[#allocation9 + $0xb8] sm:$0xff] %v909
      %974 = vst [vmem:[#allocation9 + $0xc0] sm:$0xff] %v910
      %975 = vst [vmem:[#allocation9 + $0xc8] sm:$0xff] %v911
      %976 = vst [vmem:[#allocation9 + $0xd0] sm:$0xff] %v912
      %977 = vst [vmem:[#allocation9 + $0xd8] sm:$0xff] %v913
      %978 = vst [vmem:[#allocation9 + $0xe0] sm:$0xff] %v914
      %979 = vst [vmem:[#allocation9 + $0xe8] sm:$0xff] %v915
      %980 = vst [vmem:[#allocation9 + $0xf0] sm:$0xff] %v916
      %981 = vst [vmem:[#allocation9 + $0xf8] sm:$0xff] %v917
      %982 = vst [vmem:[#allocation9 + $0x100] sm:$0xff] %v918
      %983 = vst [vmem:[#allocation9 + $0x108] sm:$0xff] %v919
      %984 = vst [vmem:[#allocation9 + $0x110] sm:$0xff] %v920
      %985 = vst [vmem:[#allocation9 + $0x118] sm:$0xff] %v921
      %986 = vst [vmem:[#allocation9 + $0x120] sm:$0xff] %v922
      %987 = vst [vmem:[#allocation9 + $0x128] sm:$0xff] %v923
      %988 = vst [vmem:[#allocation9 + $0x130] sm:$0xff] %v924
      %989 = vst [vmem:[#allocation9 + $0x138] sm:$0xff] %v925
      %990 = vst [vmem:[#allocation9 + $0x140] sm:$0xff] %v926
      %991 = vst [vmem:[#allocation9 + $0x148] sm:$0xff] %v927
      %992 = vst [vmem:[#allocation9 + $0x150] sm:$0xff] %v928
      %993 = vst [vmem:[#allocation9 + $0x158] sm:$0xff] %v929
      %994 = vst [vmem:[#allocation9 + $0x160] sm:$0xff] %v930
      %995 = vst [vmem:[#allocation9 + $0x168] sm:$0xff] %v931
      %996 = vst [vmem:[#allocation9 + $0x170] sm:$0xff] %v932
      %997 = vst [vmem:[#allocation9 + $0x178] sm:$0xff] %v933
      %998 = vst [vmem:[#allocation9 + $0x180] sm:$0xff] %v934
      %999 = vst [vmem:[#allocation9 + $0x188] sm:$0xff] %v935
      %1000 = vst [vmem:[#allocation9 + $0x190] sm:$0xff] %v936
      %1001 = vst [vmem:[#allocation9 + $0x198] sm:$0xff] %v937
      %1002 = vst [vmem:[#allocation9 + $0x1a0] sm:$0xff] %v938
      %1003 = vst [vmem:[#allocation9 + $0x1a8] sm:$0xff] %v939
      %1004 = vst [vmem:[#allocation9 + $0x1b0] sm:$0xff] %v940
      %1005 = vst [vmem:[#allocation9 + $0x1b8] sm:$0xff] %v941
      %1006 = vst [vmem:[#allocation9 + $0x1c0] sm:$0xff] %v942
      %1007 = vst [vmem:[#allocation9 + $0x1c8] sm:$0xff] %v943
      %1008 = vst [vmem:[#allocation9 + $0x1d0] sm:$0xff] %v944
      %1009 = vst [vmem:[#allocation9 + $0x1d8] sm:$0xff] %v945
      %1010 = vst [vmem:[#allocation9 + $0x1e0] sm:$0xff] %v946
      %1011 = vst [vmem:[#allocation9 + $0x1e8] sm:$0xff] %v947
      %1012 = vst [vmem:[#allocation9 + $0x1f0] sm:$0xff] %v948
      %1013 = vst [vmem:[#allocation9 + $0x1f8] sm:$0xff] %v949
    $region33: #{decoder_rnn_forward.3} parent=1 // pred_fallthru
      _
    // Predicated region
    $region34: #{decoder_rnn_forward.3} parent=1 // pred_check
      _
    $region35: #{decoder_rnn_forward.3} parent=1 // pred_check_branch
      %1015 = sbr.rel (0) target = $region37
    $region36: #{decoder_rnn_forward.3} parent=1 // pred_region
      %s1017 = ssub.s32 8192, 8192
      %1018 = vsyncadd [#allocation5], %s1017
      %s1019 = sshll.u32 [#allocation9], 4
      %s1020 = int_to_ptr.vmem [resolvable:$true] %s1019
      %1025 = dma.vmem_to_hbm [thread:$0]  %s1020, 8192, %s3, [#allocation5], 512, 512, 32
    $region37: #{decoder_rnn_forward.3} parent=1 // pred_fallthru
      _
    // Predicated region
    $region38: #{decoder_rnn_forward.3} parent=1 // pred_check
      _
    $region39: #{decoder_rnn_forward.3} parent=1 // pred_check_branch
      %1027 = sbr.rel (0) target = $region41
    $region40: #{decoder_rnn_forward.3} parent=1 // pred_region
      %1028 = dma.done [#allocation5], 8192
    $region41: #{decoder_rnn_forward.3} parent=1 // pred_fallthru
      _
    %1029 = vsyncpa [#allocation4], 1
    %1030 = vsyncpa [#allocation7], 1
    %1031 = vsyncpa [#allocation5], 1

</llo_original>
